<compile_context>
chip_gen: v7x
topology: tpu7x:2x2x1
jax: 0.10.0
libtpu: 0.0.40
codegen_flags: <defaults>
</compile_context>

<pallas_src>
import functools

import jax
import jax.numpy as jnp
from jax.experimental import pallas as pl
from jax.experimental.pallas import tpu as pltpu


_HALO = 128  # right-halo width in lanes; covers ntaps - 1 for any odd ntaps <= 129


def _snse_kernel(c00_ref, w_ixpm_ref, w_icixpm_ref,   # SMEM: C00, ixpm taps, icixpm taps
                 p_ref, xm_ref, xh_ref,               # VMEM: per-row power, main tile, halo
                 y_ref,                               # VMEM out: packed result tile
                 *, ntaps, nmodes, no_icixpm):
    """One length-tile.  xm_ref: [2, R, T] re/im planes (row r = mode*B + batch),
    xh_ref: [2, R, HALO] = the next 128 input columns.  Output tile y_ref: [2, R, T]
    holds output columns [g*T, (g+1)*T); output column j needs input-local columns
    [j, j + ntaps - 1], all inside the T + HALO working window."""
    c = ntaps // 2
    R = xm_ref.shape[1]
    T = xm_ref.shape[2]
    W = T + xh_ref.shape[2]
    B = R // nmodes

    # Working window = aligned tile + right halo (both 128-aligned lane slabs).
    xw = jnp.concatenate([xm_ref[...], xh_ref[...]], axis=-1)     # [2, R, W]
    xr = xw[0]                                                    # [R, W] real plane
    xi = xw[1]                                                    # [R, W] imag plane
    p = p_ref[...]                                                # [R, 1] launch power

    def roll_modes_rows(v):
        # roll(v, 1, modes) == rotate rows by B (mode-major row ordering).
        n = v.shape[0]
        return jnp.concatenate([v[n - B:], v[:n - B]], axis=0)

    power = xr * xr + xi * xi                                     # |x|^2 (unscaled)
    if nmodes == 1:
        power_p = power                                           # mode roll is identity
        psum = power
    else:
        power_p = roll_modes_rows(power)
        psum = power + power_p
        v = power_p
        for _ in range(nmodes - 2):
            v = roll_modes_rows(v)
            psum = psum + v
    ps = 2.0 * power + power_p

    if not no_icixpm:
        if nmodes == 1:
            xrp, xip = xr, xi
        else:
            xp = jnp.concatenate([xw[:, R - B:, :], xw[:, :R - B, :]], axis=1)
            xrp, xip = xp[0], xp[1]
        # u = x * conj(roll(x, 1, modes)); re/im stacked on the sublane axis so the
        # tap loop does ONE roll + one scalar madd per tap for both planes.
        ur = xr * xrp + xi * xip
        ui = xi * xrp - xr * xip
        u2 = jnp.concatenate([ur, ui], axis=0)                    # [2R, W]
        acc_u = jnp.zeros_like(u2)
    acc_p = jnp.zeros_like(ps)

    # Zero-center "valid" cross-correlation via XLU lane rotations: column j of acc
    # holds sum_{k != c} w[k] * v[j + k - c]; for j in [c, c+T) no wrapped or padded
    # lane is ever touched (max index T + 2c - 1 <= T + HALO - 1).
    for k in range(ntaps):
        if k == c:
            continue
        sh = (c - k) % W
        acc_p = acc_p + w_ixpm_ref[k] * pltpu.roll(ps, sh, axis=1)
        if not no_icixpm:
            acc_u = acc_u + w_icixpm_ref[k] * pltpu.roll(u2, sh, axis=1)

    # phi = spm + ixpm, with the sqrt(P) scaling folded in: phi = P*(C00*psum + 2*zcv(ps))
    phi = p * (c00_ref[0] * psum + 2.0 * acc_p)
    cphi = jnp.cos(phi)                                           # EUP (has slack)
    sphi = jnp.sin(phi)
    out_r = xr * cphi - xi * sphi                                 # x * exp(1j*phi)
    out_i = xr * sphi + xi * cphi

    if not no_icixpm:
        fr = acc_u[:R]
        fi = acc_u[R:]
        # icixpm = 1j * P * roll(x, modes) * (fr + 1j*fi)
        gr = xrp * fr - xip * fi
        gi = xrp * fi + xip * fr
        out_r = out_r - p * gi
        out_i = out_i + p * gr

    # Valid output window of this tile: input-local columns [c, c + T).
    y_ref[0] = out_r[:, c:c + T]
    y_ref[1] = out_i[:, c:c + T]


def snse_filter_planar(xf, p_col, i, params, *, ntaps, nmodes,
                       no_icixpm=False, tile_l=8192):
    """Planar core.  xf: f32 [2, R, M] re/im planes, row r = mode*B + batch;
    p_col: f32 [R, 1] per-row launch power.  Returns f32 [2, R, M - ntaps + 1].
    Multi-step chains should stay in this layout and convert complex <-> planar only
    at the chain boundary (avoids two extra full HBM passes per step)."""
    assert ntaps % 2 == 1 and ntaps <= _HALO + 1, "halo sized for odd ntaps <= 129"
    assert tile_l % 128 == 0
    _, R, M = xf.shape
    assert M >= ntaps
    Lout = M - ntaps + 1

    T = min(tile_l, pl.cdiv(Lout, 128) * 128)      # tile width, multiple of 128
    n_tiles = pl.cdiv(Lout, T)
    Mpad = n_tiles * T + _HALO                     # >= M because ntaps <= 129
    if Mpad != M:
        xf = jnp.pad(xf, ((0, 0), (0, 0), (0, Mpad - M)))

    # ModuleList[min(i, len-1)]  (i must be a static Python int, as in the module).
    n_filt = params["w_ixpm"].shape[0]
    idx = min(int(i), n_filt - 1)
    w_ixpm = params["w_ixpm"][idx].astype(jnp.float32)            # [ntaps]
    w_icixpm = params["w_icixpm"][idx].astype(jnp.float32)        # [ntaps]
    c00 = jnp.reshape(params["C00"], (1,)).astype(jnp.float32)

    kernel = functools.partial(_snse_kernel, ntaps=ntaps, nmodes=nmodes,
                               no_icixpm=no_icixpm)
    hb = T // _HALO                                # halo block-index stride
    smem = pl.BlockSpec(memory_space=pltpu.MemorySpace.SMEM)

    yf = pl.pallas_call(
        kernel,
        out_shape=jax.ShapeDtypeStruct((2, R, n_tiles * T), jnp.float32),
        grid=(n_tiles,),
        in_specs=[smem, smem, smem,
                  pl.BlockSpec((R, 1), lambda g: (0, 0)),
                  pl.BlockSpec((2, R, T), lambda g: (0, 0, g)),             # main tile
                  pl.BlockSpec((2, R, _HALO), lambda g: (0, 0, (g + 1) * hb))],  # halo
        out_specs=pl.BlockSpec((2, R, T), lambda g: (0, 0, g)),
        compiler_params=pltpu.CompilerParams(
            dimension_semantics=("parallel",),      # shard tiles across TCs on v7x
            vmem_limit_bytes=48 * 1024 * 1024),
    )(c00, w_ixpm, w_icixpm, p_col, xf, xf)

    return yf[:, :, :Lout]


def snse_filter_forward(x, task_info, i, params, *, ntaps, no_icixpm=False, tile_l=8192):
    """x: complex64 [B, M, Nmodes] -> complex64 [B, M - ntaps + 1, Nmodes]."""
    B, M, Nmodes = x.shape
    R = Nmodes * B
    Lout = M - ntaps + 1

    # get_power(task_info): launch power in dBm (column 0) -> linear, split over modes.
    P = (10.0 ** (task_info[:, 0].astype(jnp.float32) / 10.0)) / Nmodes
    p_col = jnp.tile(P, Nmodes).reshape(R, 1).astype(jnp.float32)  # row m*B+b -> P[b]

    # complex [B, M, Nmodes] -> planar f32 [2, Nmodes*B, M] (row r = mode*B + batch).
    xf = jnp.stack([jnp.real(x), jnp.imag(x)], axis=0)             # [2, B, M, Nmodes]
    xf = jnp.transpose(xf, (0, 3, 1, 2)).reshape(2, R, M).astype(jnp.float32)

    yf = snse_filter_planar(xf, p_col, i, params, ntaps=ntaps, nmodes=Nmodes,
                            no_icixpm=no_icixpm, tile_l=tile_l)

    yf = yf.reshape(2, Nmodes, B, Lout)
    y = jax.lax.complex(yf[0], yf[1]).astype(jnp.complex64)        # [Nmodes, B, Lout]
    return jnp.transpose(y, (1, 2, 0))


def _snse_reference(x, task_info, i, params, *, ntaps, no_icixpm=False):
    """Pure-JAX transcription of the PyTorch forward (for correctness checking)."""
    B, M, Nmodes = x.shape
    c = ntaps // 2
    Lv = M - ntaps + 1
    P = (10.0 ** (task_info[:, 0].astype(jnp.float32) / 10.0)) / Nmodes
    s = jnp.sqrt(P)[:, None, None]
    xs = x * s
    power = jnp.abs(xs) ** 2
    ps = 2.0 * power + jnp.roll(power, 1, axis=-1)

    n_filt = params["w_ixpm"].shape[0]
    idx = min(int(i), n_filt - 1)
    w1 = params["w_ixpm"][idx].astype(jnp.float32)
    w2 = params["w_icixpm"][idx].astype(jnp.float32)
    c00 = params["C00"].astype(jnp.float32)

    def trunc(v):
        return v[:, c:M - c]

    def zcv(v, w):
        out = jnp.zeros((B, Lv, Nmodes), v.dtype)
        for k in range(ntaps):
            if k == c:
                continue
            out = out + w[k] * v[:, k:k + Lv]
        return out

    spm = c00 * jnp.sum(trunc(power), axis=-1, keepdims=True)
    phi = spm + 2.0 * zcv(ps, w1)
    xt = trunc(xs)
    out = xt * jnp.exp(1j * phi)
    if not no_icixpm:
        u = xs * jnp.conj(jnp.roll(xs, 1, axis=-1))
        f = zcv(jnp.real(u), w2) + 1j * zcv(jnp.imag(u), w2)
        out = out + 1j * (jnp.roll(xt, 1, axis=-1) * f)
    return (out / s).astype(jnp.complex64)


if __name__ == "__main__":
    key = jax.random.PRNGKey(0)
    ks = jax.random.split(key, 8)

    # --- Case 1: Nmodes=2; run both single-tile and multi-tile (halo-crossing) paths.
    B, M, Nmodes, ntaps, n_filt = 2, 256, 2, 11, 3
    xre = jax.random.normal(ks[0], (B, M, Nmodes), jnp.float32)
    xim = jax.random.normal(ks[1], (B, M, Nmodes), jnp.float32)
    x = (xre + 1j * xim).astype(jnp.complex64)
    # task_info: [B, 4] = (launch power dBm, Fi, Fs, Nch) — only column 0 is used here.
    task_info = jnp.array([[0.0, 0.0, 80e9, 1.0],
                           [2.0, 0.0, 80e9, 1.0]], jnp.float32)
    # The PyTorch module zero-initializes these; use small deterministic non-zero
    # values so the kernel math is actually exercised.
    params = {
        "C00": jnp.asarray(0.05, jnp.float32),
        "w_ixpm": 0.01 * jax.random.normal(ks[2], (n_filt, ntaps), jnp.float32),
        "w_icixpm": 0.01 * jax.random.normal(ks[3], (n_filt, ntaps), jnp.float32),
    }
    y_ref = _snse_reference(x, task_info, 1, params, ntaps=ntaps)
    for tile_l in (8192, 128):
        y = jax.block_until_ready(
            snse_filter_forward(x, task_info, i=1, params=params, ntaps=ntaps,
                                tile_l=tile_l))
        assert y.shape == (B, M - ntaps + 1, Nmodes), y.shape
        assert y.dtype == jnp.complex64, y.dtype
        err = float(jnp.max(jnp.abs(y - y_ref)))
        assert err < 1e-3, f"tile_l={tile_l}: max |kernel - reference| = {err}"

    # --- Case 2: Nmodes=1 path (identity mode roll) with clamped filter index.
    B1, M1, Nm1, nt1, nf1 = 3, 200, 1, 7, 2
    xre1 = jax.random.normal(ks[4], (B1, M1, Nm1), jnp.float32)
    xim1 = jax.random.normal(ks[5], (B1, M1, Nm1), jnp.float32)
    x1 = (xre1 + 1j * xim1).astype(jnp.complex64)
    task_info1 = jnp.array([[0.0, 0.0, 80e9, 1.0],
                            [1.0, 0.0, 80e9, 1.0],
                            [2.0, 0.0, 80e9, 1.0]], jnp.float32)
    params1 = {
        "C00": jnp.asarray(-0.03, jnp.float32),
        "w_ixpm": 0.01 * jax.random.normal(ks[6], (nf1, nt1), jnp.float32),
        "w_icixpm": 0.01 * jax.random.normal(ks[7], (nf1, nt1), jnp.float32),
    }
    y1 = jax.block_until_ready(
        snse_filter_forward(x1, task_info1, i=5, params=params1, ntaps=nt1))
    y1_ref = _snse_reference(x1, task_info1, 5, params1, ntaps=nt1)
    assert y1.shape == (B1, M1 - nt1 + 1, Nm1), y1.shape
    err1 = float(jnp.max(jnp.abs(y1 - y1_ref)))
    assert err1 < 1e-3, f"Nmodes=1: max |kernel - reference| = {err1}"

    print("KERNEL_OK")
</pallas_src>

<mosaic_0001>
module attributes {stable_mosaic.version = 11 : i64} {
  func.func @_snse_kernel(%arg0: i32, %arg1: memref<1xf32, #tpu.memory_space<smem>>, %arg2: memref<11xf32, #tpu.memory_space<smem>>, %arg3: memref<11xf32, #tpu.memory_space<smem>>, %arg4: memref<4x1xf32, #tpu.memory_space<vmem>>, %arg5: memref<2x4x256xf32, #tpu.memory_space<vmem>>, %arg6: memref<2x4x128xf32, #tpu.memory_space<vmem>>, %arg7: memref<2x4x256xf32, #tpu.memory_space<vmem>>) attributes {dimension_semantics = [#tpu.dimension_semantics<parallel>], iteration_bounds = array<i64: 1>, scalar_prefetch = 0 : i64, scratch_operands = 0 : i64, tpu.core_type = #tpu.core_type<tc>, window_params = [{transform_indices = @transform_0, window_bounds = array<i64: 1>}, {transform_indices = @transform_1, window_bounds = array<i64: 11>}, {transform_indices = @transform_2, window_bounds = array<i64: 11>}, {pipeline_mode = #tpu.pipeline_mode<synchronous>, transform_indices = @transform_3, window_bounds = array<i64: 4, 1>}, {transform_indices = @transform_4, window_bounds = array<i64: 2, 4, 256>}, {transform_indices = @transform_5, window_bounds = array<i64: 2, 4, 128>}, {transform_indices = @transform_6, window_bounds = array<i64: 2, 4, 256>}]} {
    %c0 = arith.constant 0 : index
    %c0_0 = arith.constant 0 : index
    %c0_1 = arith.constant 0 : index
    %0 = vector.load %arg5[%c0, %c0_0, %c0_1] : memref<2x4x256xf32, #tpu.memory_space<vmem>>, vector<2x4x256xf32>
    %c0_2 = arith.constant 0 : index
    %c0_3 = arith.constant 0 : index
    %c0_4 = arith.constant 0 : index
    %1 = vector.load %arg6[%c0_2, %c0_3, %c0_4] : memref<2x4x128xf32, #tpu.memory_space<vmem>>, vector<2x4x128xf32>
    %2 = tpu.concatenate %0, %1 in 2 : vector<2x4x256xf32>, vector<2x4x128xf32> -> vector<2x4x384xf32>
    %3 = vector.extract_strided_slice %2 {offsets = [0, 0, 0], sizes = [1, 4, 384], strides = [1, 1, 1]} : vector<2x4x384xf32> to vector<1x4x384xf32>
    %4 = vector.shape_cast %3 : vector<1x4x384xf32> to vector<4x384xf32>
    %5 = vector.extract_strided_slice %2 {offsets = [1, 0, 0], sizes = [1, 4, 384], strides = [1, 1, 1]} : vector<2x4x384xf32> to vector<1x4x384xf32>
    %6 = vector.shape_cast %5 : vector<1x4x384xf32> to vector<4x384xf32>
    %c0_5 = arith.constant 0 : index
    %c0_6 = arith.constant 0 : index
    %7 = vector.load %arg4[%c0_5, %c0_6] : memref<4x1xf32, #tpu.memory_space<vmem>>, vector<4x1xf32>
    %8 = arith.mulf %4, %4 : vector<4x384xf32>
    %9 = arith.mulf %6, %6 : vector<4x384xf32>
    %10 = arith.addf %8, %9 : vector<4x384xf32>
    %11 = vector.extract_strided_slice %10 {offsets = [2, 0], sizes = [2, 384], strides = [1, 1]} : vector<4x384xf32> to vector<2x384xf32>
    %12 = vector.extract_strided_slice %10 {offsets = [0, 0], sizes = [2, 384], strides = [1, 1]} : vector<4x384xf32> to vector<2x384xf32>
    %13 = tpu.concatenate %11, %12 in 0 : vector<2x384xf32>, vector<2x384xf32> -> vector<4x384xf32>
    %14 = arith.addf %10, %13 : vector<4x384xf32>
    %cst = arith.constant 2.000000e+00 : f32
    %15 = vector.broadcast %cst : f32 to vector<4x384xf32>
    %16 = arith.mulf %15, %10 : vector<4x384xf32>
    %17 = arith.addf %16, %13 : vector<4x384xf32>
    %18 = vector.extract_strided_slice %2 {offsets = [0, 2, 0], sizes = [2, 2, 384], strides = [1, 1, 1]} : vector<2x4x384xf32> to vector<2x2x384xf32>
    %19 = vector.extract_strided_slice %2 {offsets = [0, 0, 0], sizes = [2, 2, 384], strides = [1, 1, 1]} : vector<2x4x384xf32> to vector<2x2x384xf32>
    %20 = tpu.concatenate %18, %19 in 1 : vector<2x2x384xf32>, vector<2x2x384xf32> -> vector<2x4x384xf32>
    %21 = vector.extract_strided_slice %20 {offsets = [0, 0, 0], sizes = [1, 4, 384], strides = [1, 1, 1]} : vector<2x4x384xf32> to vector<1x4x384xf32>
    %22 = vector.shape_cast %21 : vector<1x4x384xf32> to vector<4x384xf32>
    %23 = vector.extract_strided_slice %20 {offsets = [1, 0, 0], sizes = [1, 4, 384], strides = [1, 1, 1]} : vector<2x4x384xf32> to vector<1x4x384xf32>
    %24 = vector.shape_cast %23 : vector<1x4x384xf32> to vector<4x384xf32>
    %25 = arith.mulf %4, %22 : vector<4x384xf32>
    %26 = arith.mulf %6, %24 : vector<4x384xf32>
    %27 = arith.addf %25, %26 : vector<4x384xf32>
    %28 = arith.mulf %6, %22 : vector<4x384xf32>
    %29 = arith.mulf %4, %24 : vector<4x384xf32>
    %30 = arith.subf %28, %29 : vector<4x384xf32>
    %31 = tpu.concatenate %27, %30 in 0 : vector<4x384xf32>, vector<4x384xf32> -> vector<8x384xf32>
    %cst_7 = arith.constant 0.000000e+00 : f32
    %32 = vector.broadcast %cst_7 : f32 to vector<8x384xf32>
    %cst_8 = arith.constant 0.000000e+00 : f32
    %33 = vector.broadcast %cst_8 : f32 to vector<4x384xf32>
    %c0_9 = arith.constant 0 : index
    %34 = memref.load %arg2[%c0_9] : memref<11xf32, #tpu.memory_space<smem>>
    %c5_i32 = arith.constant 5 : i32
    %35 = tpu.dynamic_rotate %17 by %c5_i32 dim 1 : vector<4x384xf32>, i32 -> vector<4x384xf32>
    %36 = vector.broadcast %34 : f32 to vector<4x384xf32>
    %37 = arith.mulf %36, %35 : vector<4x384xf32>
    %38 = arith.addf %33, %37 : vector<4x384xf32>
    %c0_10 = arith.constant 0 : index
    %39 = memref.load %arg3[%c0_10] : memref<11xf32, #tpu.memory_space<smem>>
    %c5_i32_11 = arith.constant 5 : i32
    %40 = tpu.dynamic_rotate %31 by %c5_i32_11 dim 1 : vector<8x384xf32>, i32 -> vector<8x384xf32>
    %41 = vector.broadcast %39 : f32 to vector<8x384xf32>
    %42 = arith.mulf %41, %40 : vector<8x384xf32>
    %43 = arith.addf %32, %42 : vector<8x384xf32>
    %c1 = arith.constant 1 : index
    %44 = memref.load %arg2[%c1] : memref<11xf32, #tpu.memory_space<smem>>
    %c4_i32 = arith.constant 4 : i32
    %45 = tpu.dynamic_rotate %17 by %c4_i32 dim 1 : vector<4x384xf32>, i32 -> vector<4x384xf32>
    %46 = vector.broadcast %44 : f32 to vector<4x384xf32>
    %47 = arith.mulf %46, %45 : vector<4x384xf32>
    %48 = arith.addf %38, %47 : vector<4x384xf32>
    %c1_12 = arith.constant 1 : index
    %49 = memref.load %arg3[%c1_12] : memref<11xf32, #tpu.memory_space<smem>>
    %c4_i32_13 = arith.constant 4 : i32
    %50 = tpu.dynamic_rotate %31 by %c4_i32_13 dim 1 : vector<8x384xf32>, i32 -> vector<8x384xf32>
    %51 = vector.broadcast %49 : f32 to vector<8x384xf32>
    %52 = arith.mulf %51, %50 : vector<8x384xf32>
    %53 = arith.addf %43, %52 : vector<8x384xf32>
    %c2 = arith.constant 2 : index
    %54 = memref.load %arg2[%c2] : memref<11xf32, #tpu.memory_space<smem>>
    %c3_i32 = arith.constant 3 : i32
    %55 = tpu.dynamic_rotate %17 by %c3_i32 dim 1 : vector<4x384xf32>, i32 -> vector<4x384xf32>
    %56 = vector.broadcast %54 : f32 to vector<4x384xf32>
    %57 = arith.mulf %56, %55 : vector<4x384xf32>
    %58 = arith.addf %48, %57 : vector<4x384xf32>
    %c2_14 = arith.constant 2 : index
    %59 = memref.load %arg3[%c2_14] : memref<11xf32, #tpu.memory_space<smem>>
    %c3_i32_15 = arith.constant 3 : i32
    %60 = tpu.dynamic_rotate %31 by %c3_i32_15 dim 1 : vector<8x384xf32>, i32 -> vector<8x384xf32>
    %61 = vector.broadcast %59 : f32 to vector<8x384xf32>
    %62 = arith.mulf %61, %60 : vector<8x384xf32>
    %63 = arith.addf %53, %62 : vector<8x384xf32>
    %c3 = arith.constant 3 : index
    %64 = memref.load %arg2[%c3] : memref<11xf32, #tpu.memory_space<smem>>
    %c2_i32 = arith.constant 2 : i32
    %65 = tpu.dynamic_rotate %17 by %c2_i32 dim 1 : vector<4x384xf32>, i32 -> vector<4x384xf32>
    %66 = vector.broadcast %64 : f32 to vector<4x384xf32>
    %67 = arith.mulf %66, %65 : vector<4x384xf32>
    %68 = arith.addf %58, %67 : vector<4x384xf32>
    %c3_16 = arith.constant 3 : index
    %69 = memref.load %arg3[%c3_16] : memref<11xf32, #tpu.memory_space<smem>>
    %c2_i32_17 = arith.constant 2 : i32
    %70 = tpu.dynamic_rotate %31 by %c2_i32_17 dim 1 : vector<8x384xf32>, i32 -> vector<8x384xf32>
    %71 = vector.broadcast %69 : f32 to vector<8x384xf32>
    %72 = arith.mulf %71, %70 : vector<8x384xf32>
    %73 = arith.addf %63, %72 : vector<8x384xf32>
    %c4 = arith.constant 4 : index
    %74 = memref.load %arg2[%c4] : memref<11xf32, #tpu.memory_space<smem>>
    %c1_i32 = arith.constant 1 : i32
    %75 = tpu.dynamic_rotate %17 by %c1_i32 dim 1 : vector<4x384xf32>, i32 -> vector<4x384xf32>
    %76 = vector.broadcast %74 : f32 to vector<4x384xf32>
    %77 = arith.mulf %76, %75 : vector<4x384xf32>
    %78 = arith.addf %68, %77 : vector<4x384xf32>
    %c4_18 = arith.constant 4 : index
    %79 = memref.load %arg3[%c4_18] : memref<11xf32, #tpu.memory_space<smem>>
    %c1_i32_19 = arith.constant 1 : i32
    %80 = tpu.dynamic_rotate %31 by %c1_i32_19 dim 1 : vector<8x384xf32>, i32 -> vector<8x384xf32>
    %81 = vector.broadcast %79 : f32 to vector<8x384xf32>
    %82 = arith.mulf %81, %80 : vector<8x384xf32>
    %83 = arith.addf %73, %82 : vector<8x384xf32>
    %c6 = arith.constant 6 : index
    %84 = memref.load %arg2[%c6] : memref<11xf32, #tpu.memory_space<smem>>
    %c383_i32 = arith.constant 383 : i32
    %85 = tpu.dynamic_rotate %17 by %c383_i32 dim 1 : vector<4x384xf32>, i32 -> vector<4x384xf32>
    %86 = vector.broadcast %84 : f32 to vector<4x384xf32>
    %87 = arith.mulf %86, %85 : vector<4x384xf32>
    %88 = arith.addf %78, %87 : vector<4x384xf32>
    %c6_20 = arith.constant 6 : index
    %89 = memref.load %arg3[%c6_20] : memref<11xf32, #tpu.memory_space<smem>>
    %c383_i32_21 = arith.constant 383 : i32
    %90 = tpu.dynamic_rotate %31 by %c383_i32_21 dim 1 : vector<8x384xf32>, i32 -> vector<8x384xf32>
    %91 = vector.broadcast %89 : f32 to vector<8x384xf32>
    %92 = arith.mulf %91, %90 : vector<8x384xf32>
    %93 = arith.addf %83, %92 : vector<8x384xf32>
    %c7 = arith.constant 7 : index
    %94 = memref.load %arg2[%c7] : memref<11xf32, #tpu.memory_space<smem>>
    %c382_i32 = arith.constant 382 : i32
    %95 = tpu.dynamic_rotate %17 by %c382_i32 dim 1 : vector<4x384xf32>, i32 -> vector<4x384xf32>
    %96 = vector.broadcast %94 : f32 to vector<4x384xf32>
    %97 = arith.mulf %96, %95 : vector<4x384xf32>
    %98 = arith.addf %88, %97 : vector<4x384xf32>
    %c7_22 = arith.constant 7 : index
    %99 = memref.load %arg3[%c7_22] : memref<11xf32, #tpu.memory_space<smem>>
    %c382_i32_23 = arith.constant 382 : i32
    %100 = tpu.dynamic_rotate %31 by %c382_i32_23 dim 1 : vector<8x384xf32>, i32 -> vector<8x384xf32>
    %101 = vector.broadcast %99 : f32 to vector<8x384xf32>
    %102 = arith.mulf %101, %100 : vector<8x384xf32>
    %103 = arith.addf %93, %102 : vector<8x384xf32>
    %c8 = arith.constant 8 : index
    %104 = memref.load %arg2[%c8] : memref<11xf32, #tpu.memory_space<smem>>
    %c381_i32 = arith.constant 381 : i32
    %105 = tpu.dynamic_rotate %17 by %c381_i32 dim 1 : vector<4x384xf32>, i32 -> vector<4x384xf32>
    %106 = vector.broadcast %104 : f32 to vector<4x384xf32>
    %107 = arith.mulf %106, %105 : vector<4x384xf32>
    %108 = arith.addf %98, %107 : vector<4x384xf32>
    %c8_24 = arith.constant 8 : index
    %109 = memref.load %arg3[%c8_24] : memref<11xf32, #tpu.memory_space<smem>>
    %c381_i32_25 = arith.constant 381 : i32
    %110 = tpu.dynamic_rotate %31 by %c381_i32_25 dim 1 : vector<8x384xf32>, i32 -> vector<8x384xf32>
    %111 = vector.broadcast %109 : f32 to vector<8x384xf32>
    %112 = arith.mulf %111, %110 : vector<8x384xf32>
    %113 = arith.addf %103, %112 : vector<8x384xf32>
    %c9 = arith.constant 9 : index
    %114 = memref.load %arg2[%c9] : memref<11xf32, #tpu.memory_space<smem>>
    %c380_i32 = arith.constant 380 : i32
    %115 = tpu.dynamic_rotate %17 by %c380_i32 dim 1 : vector<4x384xf32>, i32 -> vector<4x384xf32>
    %116 = vector.broadcast %114 : f32 to vector<4x384xf32>
    %117 = arith.mulf %116, %115 : vector<4x384xf32>
    %118 = arith.addf %108, %117 : vector<4x384xf32>
    %c9_26 = arith.constant 9 : index
    %119 = memref.load %arg3[%c9_26] : memref<11xf32, #tpu.memory_space<smem>>
    %c380_i32_27 = arith.constant 380 : i32
    %120 = tpu.dynamic_rotate %31 by %c380_i32_27 dim 1 : vector<8x384xf32>, i32 -> vector<8x384xf32>
    %121 = vector.broadcast %119 : f32 to vector<8x384xf32>
    %122 = arith.mulf %121, %120 : vector<8x384xf32>
    %123 = arith.addf %113, %122 : vector<8x384xf32>
    %c10 = arith.constant 10 : index
    %124 = memref.load %arg2[%c10] : memref<11xf32, #tpu.memory_space<smem>>
    %c379_i32 = arith.constant 379 : i32
    %125 = tpu.dynamic_rotate %17 by %c379_i32 dim 1 : vector<4x384xf32>, i32 -> vector<4x384xf32>
    %126 = vector.broadcast %124 : f32 to vector<4x384xf32>
    %127 = arith.mulf %126, %125 : vector<4x384xf32>
    %128 = arith.addf %118, %127 : vector<4x384xf32>
    %c10_28 = arith.constant 10 : index
    %129 = memref.load %arg3[%c10_28] : memref<11xf32, #tpu.memory_space<smem>>
    %c379_i32_29 = arith.constant 379 : i32
    %130 = tpu.dynamic_rotate %31 by %c379_i32_29 dim 1 : vector<8x384xf32>, i32 -> vector<8x384xf32>
    %131 = vector.broadcast %129 : f32 to vector<8x384xf32>
    %132 = arith.mulf %131, %130 : vector<8x384xf32>
    %133 = arith.addf %123, %132 : vector<8x384xf32>
    %c0_30 = arith.constant 0 : index
    %134 = memref.load %arg1[%c0_30] : memref<1xf32, #tpu.memory_space<smem>>
    %135 = vector.broadcast %134 : f32 to vector<4x384xf32>
    %136 = arith.mulf %135, %14 : vector<4x384xf32>
    %cst_31 = arith.constant 2.000000e+00 : f32
    %137 = vector.broadcast %cst_31 : f32 to vector<4x384xf32>
    %138 = arith.mulf %137, %128 : vector<4x384xf32>
    %139 = arith.addf %136, %138 : vector<4x384xf32>
    %140 = vector.broadcast %7 : vector<4x1xf32> to vector<4x384xf32>
    %141 = arith.mulf %140, %139 : vector<4x384xf32>
    %142 = math.cos %141 : vector<4x384xf32>
    %143 = math.sin %141 : vector<4x384xf32>
    %144 = arith.mulf %4, %142 : vector<4x384xf32>
    %145 = arith.mulf %6, %143 : vector<4x384xf32>
    %146 = arith.subf %144, %145 : vector<4x384xf32>
    %147 = arith.mulf %4, %143 : vector<4x384xf32>
    %148 = arith.mulf %6, %142 : vector<4x384xf32>
    %149 = arith.addf %147, %148 : vector<4x384xf32>
    %150 = vector.extract_strided_slice %133 {offsets = [0, 0], sizes = [4, 384], strides = [1, 1]} : vector<8x384xf32> to vector<4x384xf32>
    %151 = vector.extract_strided_slice %133 {offsets = [4, 0], sizes = [4, 384], strides = [1, 1]} : vector<8x384xf32> to vector<4x384xf32>
    %152 = arith.mulf %22, %150 : vector<4x384xf32>
    %153 = arith.mulf %24, %151 : vector<4x384xf32>
    %154 = arith.subf %152, %153 : vector<4x384xf32>
    %155 = arith.mulf %22, %151 : vector<4x384xf32>
    %156 = arith.mulf %24, %150 : vector<4x384xf32>
    %157 = arith.addf %155, %156 : vector<4x384xf32>
    %158 = vector.broadcast %7 : vector<4x1xf32> to vector<4x384xf32>
    %159 = arith.mulf %158, %157 : vector<4x384xf32>
    %160 = arith.subf %146, %159 : vector<4x384xf32>
    %161 = vector.broadcast %7 : vector<4x1xf32> to vector<4x384xf32>
    %162 = arith.mulf %161, %154 : vector<4x384xf32>
    %163 = arith.addf %149, %162 : vector<4x384xf32>
    %164 = vector.extract_strided_slice %160 {offsets = [0, 5], sizes = [4, 256], strides = [1, 1]} : vector<4x384xf32> to vector<4x256xf32>
    %c0_32 = arith.constant 0 : index
    %c0_33 = arith.constant 0 : index
    %c0_34 = arith.constant 0 : index
    %165 = vector.load %arg7[%c0_32, %c0_33, %c0_34] : memref<2x4x256xf32, #tpu.memory_space<vmem>>, vector<1x4x256xf32>
    %166 = vector.shape_cast %165 : vector<1x4x256xf32> to vector<4x256xf32>
    %167 = vector.shape_cast %164 : vector<4x256xf32> to vector<1x4x256xf32>
    tpu.vector_store %arg7[%c0_32, %c0_33, %c0_34], %167 {strides = array<i32>} : memref<2x4x256xf32, #tpu.memory_space<vmem>>, vector<1x4x256xf32>,
    %168 = vector.extract_strided_slice %163 {offsets = [0, 5], sizes = [4, 256], strides = [1, 1]} : vector<4x384xf32> to vector<4x256xf32>
    %c1_35 = arith.constant 1 : index
    %c0_36 = arith.constant 0 : index
    %c0_37 = arith.constant 0 : index
    %169 = vector.load %arg7[%c1_35, %c0_36, %c0_37] : memref<2x4x256xf32, #tpu.memory_space<vmem>>, vector<1x4x256xf32>
    %170 = vector.shape_cast %169 : vector<1x4x256xf32> to vector<4x256xf32>
    %171 = vector.shape_cast %168 : vector<4x256xf32> to vector<1x4x256xf32>
    tpu.vector_store %arg7[%c1_35, %c0_36, %c0_37], %171 {strides = array<i32>} : memref<2x4x256xf32, #tpu.memory_space<vmem>>, vector<1x4x256xf32>,
    return
  }
  func.func @transform_0(%arg0: i32) -> i32 {
    %c0_i32 = arith.constant 0 : i32
    %c0_i32_0 = arith.constant 0 : i32
    return %c0_i32 : i32
  }
  func.func @transform_1(%arg0: i32) -> i32 {
    %c0_i32 = arith.constant 0 : i32
    %c0_i32_0 = arith.constant 0 : i32
    return %c0_i32 : i32
  }
  func.func @transform_2(%arg0: i32) -> i32 {
    %c0_i32 = arith.constant 0 : i32
    %c0_i32_0 = arith.constant 0 : i32
    return %c0_i32 : i32
  }
  func.func @transform_3(%arg0: i32) -> (i32, i32) {
    %c0_i32 = arith.constant 0 : i32
    %c0_i32_0 = arith.constant 0 : i32
    %c0_i32_1 = arith.constant 0 : i32
    return %c0_i32, %c0_i32_0 : i32, i32
  }
  func.func @transform_4(%arg0: i32) -> (i32, i32, i32) {
    %c0_i32 = arith.constant 0 : i32
    %c0_i32_0 = arith.constant 0 : i32
    %c0_i32_1 = arith.constant 0 : i32
    return %c0_i32, %c0_i32_0, %arg0 : i32, i32, i32
  }
  func.func @transform_5(%arg0: i32) -> (i32, i32, i32) {
    %c1_i32 = arith.constant 1 : i32
    %0 = arith.addi %arg0, %c1_i32 : i32
    %c2_i32 = arith.constant 2 : i32
    %1 = arith.muli %0, %c2_i32 : i32
    %c0_i32 = arith.constant 0 : i32
    %c0_i32_0 = arith.constant 0 : i32
    %c0_i32_1 = arith.constant 0 : i32
    return %c0_i32, %c0_i32_0, %1 : i32, i32, i32
  }
  func.func @transform_6(%arg0: i32) -> (i32, i32, i32) {
    %c0_i32 = arith.constant 0 : i32
    %c0_i32_0 = arith.constant 0 : i32
    %c0_i32_1 = arith.constant 0 : i32
    return %c0_i32, %c0_i32_0, %arg0 : i32, i32, i32
  }
}

</mosaic_0001>

<llo_original>
// kernel: tpu_custom_call.1
$region0: #{tpu_custom_call.1}
  #allocation0 [shape = 'u32[]', space=smem, size = 0x4, offset = 0x4, fixed_abs, tag = 'smem constant byte address 0x4 - core index']
  #allocation1 [shape = 'u32[144,128]{1,0:T(1,128)}', space=vmem, size = 0x12000, scoped, tag = 'internal scratch']
  #allocation2 [shape = 'f32[1]{0:T(128)S(6)}', space=smem, size = 0x200, scoped, tag = 'scoped memory for tpu_custom_call.1']
  %s0 = inlined_call_operand.<no memory space> [shape: f32[1], index: 0, kind: input, shape index: {}]
  %s1 = inlined_call_operand.vmem [shape: f32[11], index: 1, kind: input, shape index: {}]
  %s2 = inlined_call_operand.vmem [shape: f32[11], index: 2, kind: input, shape index: {}]
  %s3 = inlined_call_operand.vmem [shape: f32[4,1], index: 3, kind: input, shape index: {}]
  %s4 = inlined_call_operand.hbm [shape: f32[2,4,384], index: 4, kind: input, shape index: {}]
  %s5 = inlined_call_operand.hbm [shape: f32[2,4,384], index: 5, kind: input, shape index: {}]
  %s6 = inlined_call_operand.hbm [shape: f32[2,4,256], index: 6, kind: output, shape index: {}]
  %s7 = sld [smem:[#allocation0]]
  $region50: #{tpu_custom_call.1} parent=0
    _
  %s9 = ssub.s32 1, %s7
  %s10 = scalar_select 0, %s9, %s7
  %11 = sst [smem:[#allocation2]] %s0
  $region1: #{tpu_custom_call.1} parent=0
    #allocation3 [shape = 'u8[512]{0}', space=smem, size = 0x200, scoped, tag = 'input window, operand 1, single buffered']
    #allocation4 [shape = 's32[1]{0}', space=sflag, size = 0x4, scoped, tag = 'scoped memory for tpu_custom_call.1']
    #allocation5 [shape = 's32[1]{0}', space=sflag, size = 0x4, scoped, tag = 'scoped memory for tpu_custom_call.1']
    #allocation6 [shape = 's32[1]{0}', space=sflag, size = 0x4, scoped, tag = 'scoped memory for tpu_custom_call.1']
    #allocation7 [shape = 'u8[512]{0}', space=smem, size = 0x200, scoped, tag = 'input window, operand 2, single buffered']
    #allocation8 [shape = 's32[1]{0}', space=sflag, size = 0x4, scoped, tag = 'scoped memory for tpu_custom_call.1']
    #allocation9 [shape = 'u8[8192]{0}', space=vmem, size = 0x2000, scoped, tag = 'input window, operand 4, single buffered']
    #allocation10 [shape = 'u8[4096]{0}', space=vmem, size = 0x1000, scoped, tag = 'input window, operand 5, single buffered']
    #allocation11 [shape = 's32[1]{0}', space=sflag, size = 0x4, scoped, tag = 'scoped memory for tpu_custom_call.1']
    #allocation12 [shape = 'u8[8192]{0}', space=vmem, size = 0x2000, scoped, tag = 'output window, operand 0, single buffered']
    %12 = vsyncpa [#allocation6], 0
    %13 = vsyncpa [#allocation8], 0
    %14 = vsyncpa [#allocation4], 0
    %15 = vsyncpa [#allocation11], 0
    %16 = vsyncpa [#allocation5], 0
    // Predicated region
    $region2: #{tpu_custom_call.1} parent=1 // pred_check
      _
    $region3: #{tpu_custom_call.1} parent=1 // pred_check_branch
      %18 = sbr.rel (0) target = $region5
    $region4: #{tpu_custom_call.1} parent=1 // pred_region
      _
    $region5: #{tpu_custom_call.1} parent=1 // pred_fallthru
      _
    // Predicated region
    $region6: #{tpu_custom_call.1} parent=1 // pred_check
      _
    $region7: #{tpu_custom_call.1} parent=1 // pred_check_branch
      %20 = sbr.rel (0) target = $region9
    $region8: #{tpu_custom_call.1} parent=1 // pred_region
      %s22 = ssub.s32 16, 16
      %23 = vsyncadd [#allocation6], %s22
      %s25 = sshll.u32 %s1, 4
      %s26 = int_to_ptr.vmem [resolvable:$true] %s25
      %28 = dma.vmem_to_smem %s26, 16, [#allocation3], [#allocation6]
    $region9: #{tpu_custom_call.1} parent=1 // pred_fallthru
      _
    // Predicated region
    $region10: #{tpu_custom_call.1} parent=1 // pred_check
      _
    $region11: #{tpu_custom_call.1} parent=1 // pred_check_branch
      %30 = sbr.rel (0) target = $region13
    $region12: #{tpu_custom_call.1} parent=1 // pred_region
      %s32 = ssub.s32 16, 16
      %33 = vsyncadd [#allocation8], %s32
      %s35 = sshll.u32 %s2, 4
      %s36 = int_to_ptr.vmem [resolvable:$true] %s35
      %38 = dma.vmem_to_smem %s36, 16, [#allocation7], [#allocation8]
    $region13: #{tpu_custom_call.1} parent=1 // pred_fallthru
      _
    // Predicated region
    $region14: #{tpu_custom_call.1} parent=1 // pred_check
      _
    $region15: #{tpu_custom_call.1} parent=1 // pred_check_branch
      %40 = sbr.rel (0) target = $region17
    $region16: #{tpu_custom_call.1} parent=1 // pred_region
      _
    $region17: #{tpu_custom_call.1} parent=1 // pred_fallthru
      _
    // Predicated region
    $region18: #{tpu_custom_call.1} parent=1 // pred_check
      _
    $region19: #{tpu_custom_call.1} parent=1 // pred_check_branch
      %42 = sbr.rel (0) target = $region21
    $region20: #{tpu_custom_call.1} parent=1 // pred_region
      %s44 = ssub.s32 256, 256
      %45 = vsyncadd [#allocation4], %s44
      %s46 = sshll.u32 [#allocation9], 4
      %s47 = int_to_ptr.vmem [resolvable:$true] %s46
      %52 = dma.hbm_to_vmem [thread:$0]  %s4, 256, %s47, [#allocation4], 192, 128, 8
    $region21: #{tpu_custom_call.1} parent=1 // pred_fallthru
      _
    // Predicated region
    $region22: #{tpu_custom_call.1} parent=1 // pred_check
      _
    $region23: #{tpu_custom_call.1} parent=1 // pred_check_branch
      %54 = sbr.rel (0) target = $region25
    $region24: #{tpu_custom_call.1} parent=1 // pred_region
      %s55 = sadd.s32 0, 1
      %s56 = smul.u32 %s55, 2
      %s58 = ssub.s32 128, 128
      %59 = vsyncadd [#allocation11], %s58
      %s60 = smul.addr %s56, 64
      %s61 = scalar_lea.hbm %s5, %s60
      %s62 = sshll.u32 [#allocation10], 4
      %s63 = int_to_ptr.vmem [resolvable:$true] %s62
      %68 = dma.hbm_to_vmem [thread:$0]  %s61, 128, %s63, [#allocation11], 192, 64, 4
    $region25: #{tpu_custom_call.1} parent=1 // pred_fallthru
      _
    // Predicated region
    $region26: #{tpu_custom_call.1} parent=1 // pred_check
      _
    $region27: #{tpu_custom_call.1} parent=1 // pred_check_branch
      %70 = sbr.rel (0) target = $region29
    $region28: #{tpu_custom_call.1} parent=1 // pred_region
      %71 = dma.done [#allocation6], 16
    $region29: #{tpu_custom_call.1} parent=1 // pred_fallthru
      _
    // Predicated region
    $region30: #{tpu_custom_call.1} parent=1 // pred_check
      _
    $region31: #{tpu_custom_call.1} parent=1 // pred_check_branch
      %73 = sbr.rel (0) target = $region33
    $region32: #{tpu_custom_call.1} parent=1 // pred_region
      %74 = dma.done [#allocation8], 16
    $region33: #{tpu_custom_call.1} parent=1 // pred_fallthru
      _
    // Predicated region
    $region34: #{tpu_custom_call.1} parent=1 // pred_check
      _
    $region35: #{tpu_custom_call.1} parent=1 // pred_check_branch
      %76 = sbr.rel (0) target = $region37
    $region36: #{tpu_custom_call.1} parent=1 // pred_region
      %77 = dma.done [#allocation4], 256
    $region37: #{tpu_custom_call.1} parent=1 // pred_fallthru
      _
    // Predicated region
    $region38: #{tpu_custom_call.1} parent=1 // pred_check
      _
    $region39: #{tpu_custom_call.1} parent=1 // pred_check_branch
      %79 = sbr.rel (0) target = $region41
    $region40: #{tpu_custom_call.1} parent=1 // pred_region
      %80 = dma.done [#allocation11], 128
    $region41: #{tpu_custom_call.1} parent=1 // pred_fallthru
      _
    %81 = sfence
    %s82 = sadd.s32 0, 1
    %s83 = smul.u32 %s82, 2
    %v84 = vld [vmem:[#allocation9] sm:$0xff]
    %v85 = vld [vmem:[#allocation9 + $0x8] sm:$0xff]
    %v86 = vld [vmem:[#allocation10] sm:$0xf]
    %v87 = vld [vmem:[#allocation10 + $0x4] sm:$0xf]
    %v90 = vcombine.high %v84, %v84
    %v91 = vcombine.high %v85, %v85
    %v94 = vld [vmem:[%s3] sm:$0xf]
    %v95 = vmul.f32 %v84, %v84
    %v96 = vmul.f32 %v90, %v90
    %v97 = vmul.f32 %v86, %v86
    %v98 = vmul.f32 %v85, %v85
    %v99 = vmul.f32 %v91, %v91
    %v100 = vmul.f32 %v87, %v87
    %v101 = vadd.f32 %v95, %v98
    %v102 = vadd.f32 %v96, %v99
    %v103 = vadd.f32 %v97, %v100
    %v107 = vrot.slane %v101, 2
    %v108 = vrot.slane %v102, 2
    %v109 = vrot.slane %v103, 2
    %v113 = vrot.slane %v101, 6
    %v114 = vrot.slane %v102, 6
    %v115 = vrot.slane %v103, 6
    %vm119 = vcmask 1041408
    %v120 = vsel %vm119, %v107, %v113
    %v121 = vsel %vm119, %v108, %v114
    %v122 = vsel %vm119, %v109, %v115
    %v123 = vadd.f32 %v101, %v120
    %v124 = vadd.f32 %v102, %v121
    %v125 = vadd.f32 %v103, %v122
    %v126 = vmul.f32 %v101, 2.0
    %v127 = vmul.f32 %v102, 2.0
    %v128 = vmul.f32 %v103, 2.0
    %v129 = vadd.f32 %v126, %v120
    %v130 = vadd.f32 %v127, %v121
    %v131 = vadd.f32 %v128, %v122
    %v134 = vrot.slane %v84, 2
    %v135 = vrot.slane %v90, 2
    %v136 = vrot.slane %v86, 2
    %v137 = vrot.slane %v85, 2
    %v138 = vrot.slane %v91, 2
    %v139 = vrot.slane %v87, 2
    %v146 = vrot.slane %v84, 6
    %v147 = vrot.slane %v90, 6
    %v148 = vrot.slane %v86, 6
    %v149 = vrot.slane %v85, 6
    %v150 = vrot.slane %v91, 6
    %v151 = vrot.slane %v87, 6
    %v158 = vsel %vm119, %v134, %v146
    %v159 = vsel %vm119, %v135, %v147
    %v160 = vsel %vm119, %v136, %v148
    %v161 = vsel %vm119, %v137, %v149
    %v162 = vsel %vm119, %v138, %v150
    %v163 = vsel %vm119, %v139, %v151
    %v164 = vmul.f32 %v84, %v158
    %v165 = vmul.f32 %v90, %v159
    %v166 = vmul.f32 %v86, %v160
    %v167 = vmul.f32 %v85, %v161
    %v168 = vmul.f32 %v91, %v162
    %v169 = vmul.f32 %v87, %v163
    %v170 = vadd.f32 %v164, %v167
    %v171 = vadd.f32 %v165, %v168
    %v172 = vadd.f32 %v166, %v169
    %v173 = vmul.f32 %v85, %v158
    %v174 = vmul.f32 %v91, %v159
    %v175 = vmul.f32 %v87, %v160
    %v176 = vmul.f32 %v84, %v161
    %v177 = vmul.f32 %v90, %v162
    %v178 = vmul.f32 %v86, %v163
    %v179 = vsub.f32 %v173, %v176
    %v180 = vsub.f32 %v174, %v177
    %v181 = vsub.f32 %v175, %v178
    %v185 = vrot.slane %v179, 4
    %v186 = vrot.slane %v180, 4
    %v187 = vrot.slane %v181, 4
    %vm191 = vcmask 1043456
    %v192 = vsel %vm191, %v170, %v185
    %v193 = vsel %vm191, %v171, %v186
    %v194 = vsel %vm191, %v172, %v187
    %s195 = sld [smem:[#allocation3]]
    %196 = vrot.lane.b32.xlu0 %v129, 5
    %v197 = vpop.permute.xlu0 %196
    %198 = vrot.lane.b32.xlu0 %v130, 5
    %v199 = vpop.permute.xlu0 %198
    %200 = vrot.lane.b32.xlu0 %v131, 5
    %v201 = vpop.permute.xlu0 %200
    %v202 = vlaneseq
    %v203 = vand.u32 %v202, 127
    %vm204 = vcmp.lt.s32.totalorder %v203, 5
    %v205 = vsel %vm204, %v199, %v201
    %v206 = vsel %vm204, %v197, %v199
    %v207 = vsel %vm204, %v201, %v197
    %v208 = vstv %s195
    %v209 = vmul.f32 %v208, %v207
    %v210 = vmul.f32 %v208, %v206
    %v211 = vmul.f32 %v208, %v205
    %v212 = vadd.f32 %v209, 0.0
    %v213 = vadd.f32 %v210, 0.0
    %v214 = vadd.f32 %v211, 0.0
    %s215 = sld [smem:[#allocation7]]
    %216 = vrot.lane.b32.xlu0 %v192, 5
    %v217 = vpop.permute.xlu0 %216
    %218 = vrot.lane.b32.xlu0 %v193, 5
    %v219 = vpop.permute.xlu0 %218
    %220 = vrot.lane.b32.xlu0 %v194, 5
    %v221 = vpop.permute.xlu0 %220
    %v222 = vsel %vm204, %v219, %v221
    %v223 = vsel %vm204, %v217, %v219
    %v224 = vsel %vm204, %v221, %v217
    %v225 = vstv %s215
    %v226 = vmul.f32 %v225, %v224
    %v227 = vmul.f32 %v225, %v223
    %v228 = vmul.f32 %v225, %v222
    %v229 = vadd.f32 %v226, 0.0
    %v230 = vadd.f32 %v227, 0.0
    %v231 = vadd.f32 %v228, 0.0
    %s232 = sld [smem:[#allocation3 + $0x1]]
    %233 = vrot.lane.b32.xlu0 %v129, 4
    %v234 = vpop.permute.xlu0 %233
    %235 = vrot.lane.b32.xlu0 %v130, 4
    %v236 = vpop.permute.xlu0 %235
    %237 = vrot.lane.b32.xlu0 %v131, 4
    %v238 = vpop.permute.xlu0 %237
    %vm239 = vcmp.lt.s32.totalorder %v203, 4
    %v240 = vsel %vm239, %v236, %v238
    %v241 = vsel %vm239, %v234, %v236
    %v242 = vsel %vm239, %v238, %v234
    %v243 = vstv %s232
    %v244 = vmul.f32 %v243, %v242
    %v245 = vmul.f32 %v243, %v241
    %v246 = vmul.f32 %v243, %v240
    %v247 = vadd.f32 %v212, %v244
    %v248 = vadd.f32 %v213, %v245
    %v249 = vadd.f32 %v214, %v246
    %s250 = sld [smem:[#allocation7 + $0x1]]
    %251 = vrot.lane.b32.xlu0 %v192, 4
    %v252 = vpop.permute.xlu0 %251
    %253 = vrot.lane.b32.xlu0 %v193, 4
    %v254 = vpop.permute.xlu0 %253
    %255 = vrot.lane.b32.xlu0 %v194, 4
    %v256 = vpop.permute.xlu0 %255
    %v257 = vsel %vm239, %v254, %v256
    %v258 = vsel %vm239, %v252, %v254
    %v259 = vsel %vm239, %v256, %v252
    %v260 = vstv %s250
    %v261 = vmul.f32 %v260, %v259
    %v262 = vmul.f32 %v260, %v258
    %v263 = vmul.f32 %v260, %v257
    %v264 = vadd.f32 %v229, %v261
    %v265 = vadd.f32 %v230, %v262
    %v266 = vadd.f32 %v231, %v263
    %s267 = sld [smem:[#allocation3 + $0x2]]
    %268 = vrot.lane.b32.xlu0 %v129, 3
    %v269 = vpop.permute.xlu0 %268
    %270 = vrot.lane.b32.xlu0 %v130, 3
    %v271 = vpop.permute.xlu0 %270
    %272 = vrot.lane.b32.xlu0 %v131, 3
    %v273 = vpop.permute.xlu0 %272
    %vm274 = vcmp.lt.s32.totalorder %v203, 3
    %v275 = vsel %vm274, %v271, %v273
    %v276 = vsel %vm274, %v269, %v271
    %v277 = vsel %vm274, %v273, %v269
    %v278 = vstv %s267
    %v279 = vmul.f32 %v278, %v277
    %v280 = vmul.f32 %v278, %v276
    %v281 = vmul.f32 %v278, %v275
    %v282 = vadd.f32 %v247, %v279
    %v283 = vadd.f32 %v248, %v280
    %v284 = vadd.f32 %v249, %v281
    %s285 = sld [smem:[#allocation7 + $0x2]]
    %286 = vrot.lane.b32.xlu0 %v192, 3
    %v287 = vpop.permute.xlu0 %286
    %288 = vrot.lane.b32.xlu0 %v193, 3
    %v289 = vpop.permute.xlu0 %288
    %290 = vrot.lane.b32.xlu0 %v194, 3
    %v291 = vpop.permute.xlu0 %290
    %v292 = vsel %vm274, %v289, %v291
    %v293 = vsel %vm274, %v287, %v289
    %v294 = vsel %vm274, %v291, %v287
    %v295 = vstv %s285
    %v296 = vmul.f32 %v295, %v294
    %v297 = vmul.f32 %v295, %v293
    %v298 = vmul.f32 %v295, %v292
    %v299 = vadd.f32 %v264, %v296
    %v300 = vadd.f32 %v265, %v297
    %v301 = vadd.f32 %v266, %v298
    %s302 = sld [smem:[#allocation3 + $0x3]]
    %303 = vrot.lane.b32.xlu0 %v129, 2
    %v304 = vpop.permute.xlu0 %303
    %305 = vrot.lane.b32.xlu0 %v130, 2
    %v306 = vpop.permute.xlu0 %305
    %307 = vrot.lane.b32.xlu0 %v131, 2
    %v308 = vpop.permute.xlu0 %307
    %vm309 = vcmp.lt.s32.totalorder %v203, 2
    %v310 = vsel %vm309, %v306, %v308
    %v311 = vsel %vm309, %v304, %v306
    %v312 = vsel %vm309, %v308, %v304
    %v313 = vstv %s302
    %v314 = vmul.f32 %v313, %v312
    %v315 = vmul.f32 %v313, %v311
    %v316 = vmul.f32 %v313, %v310
    %v317 = vadd.f32 %v282, %v314
    %v318 = vadd.f32 %v283, %v315
    %v319 = vadd.f32 %v284, %v316
    %s320 = sld [smem:[#allocation7 + $0x3]]
    %321 = vrot.lane.b32.xlu0 %v192, 2
    %v322 = vpop.permute.xlu0 %321
    %323 = vrot.lane.b32.xlu0 %v193, 2
    %v324 = vpop.permute.xlu0 %323
    %325 = vrot.lane.b32.xlu0 %v194, 2
    %v326 = vpop.permute.xlu0 %325
    %v327 = vsel %vm309, %v324, %v326
    %v328 = vsel %vm309, %v322, %v324
    %v329 = vsel %vm309, %v326, %v322
    %v330 = vstv %s320
    %v331 = vmul.f32 %v330, %v329
    %v332 = vmul.f32 %v330, %v328
    %v333 = vmul.f32 %v330, %v327
    %v334 = vadd.f32 %v299, %v331
    %v335 = vadd.f32 %v300, %v332
    %v336 = vadd.f32 %v301, %v333
    %s337 = sld [smem:[#allocation3 + $0x4]]
    %338 = vrot.lane.b32.xlu0 %v129, 1
    %v339 = vpop.permute.xlu0 %338
    %340 = vrot.lane.b32.xlu0 %v130, 1
    %v341 = vpop.permute.xlu0 %340
    %342 = vrot.lane.b32.xlu0 %v131, 1
    %v343 = vpop.permute.xlu0 %342
    %vm344 = vcmp.lt.s32.totalorder %v203, 1
    %v345 = vsel %vm344, %v341, %v343
    %v346 = vsel %vm344, %v339, %v341
    %v347 = vsel %vm344, %v343, %v339
    %v348 = vstv %s337
    %v349 = vmul.f32 %v348, %v347
    %v350 = vmul.f32 %v348, %v346
    %v351 = vmul.f32 %v348, %v345
    %v352 = vadd.f32 %v317, %v349
    %v353 = vadd.f32 %v318, %v350
    %v354 = vadd.f32 %v319, %v351
    %s355 = sld [smem:[#allocation7 + $0x4]]
    %356 = vrot.lane.b32.xlu0 %v192, 1
    %v357 = vpop.permute.xlu0 %356
    %358 = vrot.lane.b32.xlu0 %v193, 1
    %v359 = vpop.permute.xlu0 %358
    %360 = vrot.lane.b32.xlu0 %v194, 1
    %v361 = vpop.permute.xlu0 %360
    %v362 = vsel %vm344, %v359, %v361
    %v363 = vsel %vm344, %v357, %v359
    %v364 = vsel %vm344, %v361, %v357
    %v365 = vstv %s355
    %v366 = vmul.f32 %v365, %v364
    %v367 = vmul.f32 %v365, %v363
    %v368 = vmul.f32 %v365, %v362
    %v369 = vadd.f32 %v334, %v366
    %v370 = vadd.f32 %v335, %v367
    %v371 = vadd.f32 %v336, %v368
    %s372 = sld [smem:[#allocation3 + $0x6]]
    %373 = vrot.lane.b32.xlu0 %v129, 127
    %v374 = vpop.permute.xlu0 %373
    %375 = vrot.lane.b32.xlu0 %v130, 127
    %v376 = vpop.permute.xlu0 %375
    %377 = vrot.lane.b32.xlu0 %v131, 127
    %v378 = vpop.permute.xlu0 %377
    %vm379 = vcmp.lt.s32.totalorder %v203, 127
    %v380 = vsel %vm379, %v376, %v378
    %v381 = vsel %vm379, %v374, %v376
    %v382 = vsel %vm379, %v378, %v374
    %v383 = vstv %s372
    %v384 = vmul.f32 %v383, %v381
    %v385 = vmul.f32 %v383, %v380
    %v386 = vmul.f32 %v383, %v382
    %v387 = vadd.f32 %v352, %v384
    %v388 = vadd.f32 %v353, %v385
    %v389 = vadd.f32 %v354, %v386
    %s390 = sld [smem:[#allocation7 + $0x6]]
    %391 = vrot.lane.b32.xlu0 %v192, 127
    %v392 = vpop.permute.xlu0 %391
    %393 = vrot.lane.b32.xlu0 %v193, 127
    %v394 = vpop.permute.xlu0 %393
    %395 = vrot.lane.b32.xlu0 %v194, 127
    %v396 = vpop.permute.xlu0 %395
    %v397 = vsel %vm379, %v394, %v396
    %v398 = vsel %vm379, %v392, %v394
    %v399 = vsel %vm379, %v396, %v392
    %v400 = vstv %s390
    %v401 = vmul.f32 %v400, %v398
    %v402 = vmul.f32 %v400, %v397
    %v403 = vmul.f32 %v400, %v399
    %v404 = vadd.f32 %v369, %v401
    %v405 = vadd.f32 %v370, %v402
    %v406 = vadd.f32 %v371, %v403
    %s407 = sld [smem:[#allocation3 + $0x7]]
    %408 = vrot.lane.b32.xlu0 %v129, 126
    %v409 = vpop.permute.xlu0 %408
    %410 = vrot.lane.b32.xlu0 %v130, 126
    %v411 = vpop.permute.xlu0 %410
    %412 = vrot.lane.b32.xlu0 %v131, 126
    %v413 = vpop.permute.xlu0 %412
    %vm414 = vcmp.lt.s32.totalorder %v203, 126
    %v415 = vsel %vm414, %v411, %v413
    %v416 = vsel %vm414, %v409, %v411
    %v417 = vsel %vm414, %v413, %v409
    %v418 = vstv %s407
    %v419 = vmul.f32 %v418, %v416
    %v420 = vmul.f32 %v418, %v415
    %v421 = vmul.f32 %v418, %v417
    %v422 = vadd.f32 %v387, %v419
    %v423 = vadd.f32 %v388, %v420
    %v424 = vadd.f32 %v389, %v421
    %s425 = sld [smem:[#allocation7 + $0x7]]
    %426 = vrot.lane.b32.xlu0 %v192, 126
    %v427 = vpop.permute.xlu0 %426
    %428 = vrot.lane.b32.xlu0 %v193, 126
    %v429 = vpop.permute.xlu0 %428
    %430 = vrot.lane.b32.xlu0 %v194, 126
    %v431 = vpop.permute.xlu0 %430
    %v432 = vsel %vm414, %v429, %v431
    %v433 = vsel %vm414, %v427, %v429
    %v434 = vsel %vm414, %v431, %v427
    %v435 = vstv %s425
    %v436 = vmul.f32 %v435, %v433
    %v437 = vmul.f32 %v435, %v432
    %v438 = vmul.f32 %v435, %v434
    %v439 = vadd.f32 %v404, %v436
    %v440 = vadd.f32 %v405, %v437
    %v441 = vadd.f32 %v406, %v438
    %s442 = sld [smem:[#allocation3 + $0x8]]
    %443 = vrot.lane.b32.xlu0 %v129, 125
    %v444 = vpop.permute.xlu0 %443
    %445 = vrot.lane.b32.xlu0 %v130, 125
    %v446 = vpop.permute.xlu0 %445
    %447 = vrot.lane.b32.xlu0 %v131, 125
    %v448 = vpop.permute.xlu0 %447
    %vm449 = vcmp.lt.s32.totalorder %v203, 125
    %v450 = vsel %vm449, %v446, %v448
    %v451 = vsel %vm449, %v444, %v446
    %v452 = vsel %vm449, %v448, %v444
    %v453 = vstv %s442
    %v454 = vmul.f32 %v453, %v451
    %v455 = vmul.f32 %v453, %v450
    %v456 = vmul.f32 %v453, %v452
    %v457 = vadd.f32 %v422, %v454
    %v458 = vadd.f32 %v423, %v455
    %v459 = vadd.f32 %v424, %v456
    %s460 = sld [smem:[#allocation7 + $0x8]]
    %461 = vrot.lane.b32.xlu0 %v192, 125
    %v462 = vpop.permute.xlu0 %461
    %463 = vrot.lane.b32.xlu0 %v193, 125
    %v464 = vpop.permute.xlu0 %463
    %465 = vrot.lane.b32.xlu0 %v194, 125
    %v466 = vpop.permute.xlu0 %465
    %v467 = vsel %vm449, %v464, %v466
    %v468 = vsel %vm449, %v462, %v464
    %v469 = vsel %vm449, %v466, %v462
    %v470 = vstv %s460
    %v471 = vmul.f32 %v470, %v468
    %v472 = vmul.f32 %v470, %v467
    %v473 = vmul.f32 %v470, %v469
    %v474 = vadd.f32 %v439, %v471
    %v475 = vadd.f32 %v440, %v472
    %v476 = vadd.f32 %v441, %v473
    %s477 = sld [smem:[#allocation3 + $0x9]]
    %478 = vrot.lane.b32.xlu0 %v129, 124
    %v479 = vpop.permute.xlu0 %478
    %480 = vrot.lane.b32.xlu0 %v130, 124
    %v481 = vpop.permute.xlu0 %480
    %482 = vrot.lane.b32.xlu0 %v131, 124
    %v483 = vpop.permute.xlu0 %482
    %vm484 = vcmp.lt.s32.totalorder %v203, 124
    %v485 = vsel %vm484, %v481, %v483
    %v486 = vsel %vm484, %v479, %v481
    %v487 = vsel %vm484, %v483, %v479
    %v488 = vstv %s477
    %v489 = vmul.f32 %v488, %v486
    %v490 = vmul.f32 %v488, %v485
    %v491 = vmul.f32 %v488, %v487
    %v492 = vadd.f32 %v457, %v489
    %v493 = vadd.f32 %v458, %v490
    %v494 = vadd.f32 %v459, %v491
    %s495 = sld [smem:[#allocation7 + $0x9]]
    %496 = vrot.lane.b32.xlu0 %v192, 124
    %v497 = vpop.permute.xlu0 %496
    %498 = vrot.lane.b32.xlu0 %v193, 124
    %v499 = vpop.permute.xlu0 %498
    %500 = vrot.lane.b32.xlu0 %v194, 124
    %v501 = vpop.permute.xlu0 %500
    %v502 = vsel %vm484, %v499, %v501
    %v503 = vsel %vm484, %v497, %v499
    %v504 = vsel %vm484, %v501, %v497
    %v505 = vstv %s495
    %v506 = vmul.f32 %v505, %v503
    %v507 = vmul.f32 %v505, %v502
    %v508 = vmul.f32 %v505, %v504
    %v509 = vadd.f32 %v474, %v506
    %v510 = vadd.f32 %v475, %v507
    %v511 = vadd.f32 %v476, %v508
    %s512 = sld [smem:[#allocation3 + $0xa]]
    %513 = vrot.lane.b32.xlu0 %v129, 123
    %v514 = vpop.permute.xlu0 %513
    %515 = vrot.lane.b32.xlu0 %v130, 123
    %v516 = vpop.permute.xlu0 %515
    %517 = vrot.lane.b32.xlu0 %v131, 123
    %v518 = vpop.permute.xlu0 %517
    %vm519 = vcmp.lt.s32.totalorder %v203, 123
    %v520 = vsel %vm519, %v516, %v518
    %v521 = vsel %vm519, %v514, %v516
    %v522 = vsel %vm519, %v518, %v514
    %v523 = vstv %s512
    %v524 = vmul.f32 %v523, %v521
    %v525 = vmul.f32 %v523, %v520
    %v526 = vmul.f32 %v523, %v522
    %v527 = vadd.f32 %v492, %v524
    %v528 = vadd.f32 %v493, %v525
    %v529 = vadd.f32 %v494, %v526
    %s530 = sld [smem:[#allocation7 + $0xa]]
    %531 = vrot.lane.b32.xlu0 %v192, 123
    %v532 = vpop.permute.xlu0 %531
    %533 = vrot.lane.b32.xlu0 %v193, 123
    %v534 = vpop.permute.xlu0 %533
    %535 = vrot.lane.b32.xlu0 %v194, 123
    %v536 = vpop.permute.xlu0 %535
    %v537 = vsel %vm519, %v534, %v536
    %v538 = vsel %vm519, %v532, %v534
    %v539 = vsel %vm519, %v536, %v532
    %v540 = vstv %s530
    %v541 = vmul.f32 %v540, %v538
    %v542 = vmul.f32 %v540, %v537
    %v543 = vmul.f32 %v540, %v539
    %v544 = vadd.f32 %v509, %v541
    %v545 = vadd.f32 %v510, %v542
    %v546 = vadd.f32 %v511, %v543
    %s547 = sld [smem:[#allocation2]]
    %v548 = vstv %s547
    %v549 = vmul.f32 %v548, %v123
    %v550 = vmul.f32 %v548, %v124
    %v551 = vmul.f32 %v548, %v125
    %v552 = vmul.f32 %v527, 2.0
    %v553 = vmul.f32 %v528, 2.0
    %v554 = vmul.f32 %v529, 2.0
    %v555 = vadd.f32 %v549, %v552
    %v556 = vadd.f32 %v550, %v553
    %v557 = vadd.f32 %v551, %v554
    %559 = vset.pattern.permute.xlu0 0
    %560 = vperm.xlu0 %559, %v94
    %v561 = vpop.permute.xlu0 %560
    %v563 = vmul.f32 %v561, %v555
    %v564 = vmul.f32 %v561, %v556
    %v565 = vmul.f32 %v561, %v557
    %v566 = vand.u32 2147483647, %v563
    %vm567 = vcmp.le.f32.partialorder %v566, 0.7853982
    %vm568 = vcmp.lt.s32.totalorder %v563, 0
    %v569 = vand.u32 %v563, 2139095040
    %v570 = vshrl.u32 %v569, 23
    %v571 = vsub.s32 %v570, 127
    %v572 = vand.u32 2147483647, %v563
    %v573 = vand.u32 %v572, 8388607
    %v574 = vor.u32 %v573, 8388608
    %v575 = vsub.s32 0, %v574
    %v576 = vadd.s32 %v571, 1
    %vm577 = vcmp.gt.s32.totalorder %v576, 0
    %v578 = vsel %vm577, %v576, 0
    %v579 = vshrl.u32 %v578, 5
    %v580 = vand.u32 %v578, 31
    %v581 = vsub.s32 32, %v580
    %v582 = vshrl.u32 683565275, %v581
    %v583 = vshll.u32 683565275, %v580
    %v584 = vshrl.u32 2475754826, %v581
    %v585 = vor.u32 %v583, %v584
    %v586 = vshll.u32 2475754826, %v580
    %v587 = vshrl.u32 2131351028, %v581
    %v588 = vor.u32 %v586, %v587
    %v589 = vshll.u32 2131351028, %v580
    %v590 = vshrl.u32 2102212464, %v581
    %v591 = vor.u32 %v589, %v590
    %v592 = vshll.u32 2102212464, %v580
    %v593 = vshrl.u32 920167782, %v581
    %v594 = vor.u32 %v592, %v593
    %v595 = vshll.u32 920167782, %v580
    %v596 = vshrl.u32 1326507024, %v581
    %v597 = vor.u32 %v595, %v596
    %vm598 = vcmp.lt.s32.totalorder %v579, 1
    %vm599 = vcmp.lt.s32.totalorder %v579, 2
    %vm600 = vcmp.lt.s32.totalorder %v579, 3
    %vm601 = vcmp.lt.s32.totalorder %v579, 4
    %v602 = vsel %vm598, %v582, %v585
    %v603 = vsel %vm601, %v591, 2102212464
    %v604 = vsel %vm600, %v588, %v603
    %v605 = vsel %vm599, %v602, %v604
    %v606 = vsel %vm598, %v585, %v588
    %v607 = vsel %vm601, %v594, 920167782
    %v608 = vsel %vm600, %v591, %v607
    %v609 = vsel %vm599, %v606, %v608
    %v610 = vsel %vm598, %v588, %v591
    %v611 = vsel %vm601, %v597, 1326507024
    %v612 = vsel %vm600, %v594, %v611
    %v613 = vsel %vm599, %v610, %v612
    %v614 = vshll.u32 %v574, 8
    %v615 = vmul.u32.u64.compose %v614, %v613
    %v616 = vextract.low.u32 %v615
    %v617 = vextract.high.u32 %v615
    %v618 = vmul.u32.u64.compose %v614, %v609
    %v619 = vextract.low.u32 %v618
    %v620 = vextract.high.u32 %v618
    %v621 = vmul.u32 %v614, %v605
    %v622 = vadd.s32 %v617, %v619
    %vm623 = vc.u32 %v617, %v619
    %v624 = vadd.s32 %v620, 1
    %v625 = vsel %vm623, %v624, %v620
    %v626 = vadd.s32 %v621, %v625
    %v627 = vadd.s32 %v626, 536870912
    %v628 = vshrl.u32 %v627, 30
    %v629 = vshll.u32 %v628, 30
    %v630 = vsub.s32 %v626, %v629
    %vm631 = vcmp.lt.s32.totalorder %v630, 0
    %v632 = vsub.s32 0, %v630
    %v633 = vsel %vm631, %v632, %v630
    %v634 = vclz %v633
    %v635 = vsub.s32 %v634, 2
    %vm636 = vcmp.gt.s32.totalorder 0, %v635
    %v637 = vsel %vm636, 0, %v635
    %v638 = vsub.s32 32, %v637
    %v639 = vshll.u32 %v630, %v637
    %v640 = vshrl.u32 %v622, %v638
    %v641 = vor.u32 %v639, %v640
    %v642 = vsub.s32 4294967266, %v637
    %v643 = vadd.s32 %v642, 127
    %v644 = vshll.u32 %v643, 23
    %v645 = vor.u32 4788187, %v644
    %v646 = vand.u32 2147483647, %v645
    %v648 = vcvt.s32.f32 %v641
    %v649 = vmul.f32 %v648, %v646
    %v650 = vxor.u32 %v649, 2147483648
    %v651 = vsel %vm568, %v650, %v649
    %v652 = vsub.s32 4, %v628
    %v653 = vsel %vm568, %v652, %v628
    %v654 = vsel %vm567, %v563, %v651
    %v655 = vsel %vm567, 0, %v653
    %v656 = vcosq.f32.pop %v654
    %v657 = vsinq.f32.pop %v654
    %vm658 = vweird.f32 %v563
    %v659 = vand.u32 %v655, 3
    %vm660 = vcmp.lt.s32.totalorder %v659, 2
    %vm661 = vcmp.eq.s32.totalorder %v659, 0
    %v662 = vxor.u32 %v657, 2147483648
    %v663 = vsel %vm661, %v656, %v662
    %vm664 = vcmp.eq.s32.totalorder %v659, 2
    %v665 = vxor.u32 %v656, 2147483648
    %v666 = vsel %vm664, %v665, %v657
    %v667 = vsel %vm660, %v663, %v666
    %v668 = vsel %vm658, nan, %v667
    %v669 = vand.u32 2147483647, %v564
    %vm670 = vcmp.le.f32.partialorder %v669, 0.7853982
    %vm671 = vcmp.lt.s32.totalorder %v564, 0
    %v672 = vand.u32 %v564, 2139095040
    %v673 = vshrl.u32 %v672, 23
    %v674 = vsub.s32 %v673, 127
    %v675 = vand.u32 2147483647, %v564
    %v676 = vand.u32 %v675, 8388607
    %v677 = vor.u32 %v676, 8388608
    %v678 = vsub.s32 0, %v677
    %v679 = vadd.s32 %v674, 1
    %vm680 = vcmp.gt.s32.totalorder %v679, 0
    %v681 = vsel %vm680, %v679, 0
    %v682 = vshrl.u32 %v681, 5
    %v683 = vand.u32 %v681, 31
    %v684 = vsub.s32 32, %v683
    %v685 = vshrl.u32 683565275, %v684
    %v686 = vshll.u32 683565275, %v683
    %v687 = vshrl.u32 2475754826, %v684
    %v688 = vor.u32 %v686, %v687
    %v689 = vshll.u32 2475754826, %v683
    %v690 = vshrl.u32 2131351028, %v684
    %v691 = vor.u32 %v689, %v690
    %v692 = vshll.u32 2131351028, %v683
    %v693 = vshrl.u32 2102212464, %v684
    %v694 = vor.u32 %v692, %v693
    %v695 = vshll.u32 2102212464, %v683
    %v696 = vshrl.u32 920167782, %v684
    %v697 = vor.u32 %v695, %v696
    %v698 = vshll.u32 920167782, %v683
    %v699 = vshrl.u32 1326507024, %v684
    %v700 = vor.u32 %v698, %v699
    %vm701 = vcmp.lt.s32.totalorder %v682, 1
    %vm702 = vcmp.lt.s32.totalorder %v682, 2
    %vm703 = vcmp.lt.s32.totalorder %v682, 3
    %vm704 = vcmp.lt.s32.totalorder %v682, 4
    %v705 = vsel %vm701, %v685, %v688
    %v706 = vsel %vm704, %v694, 2102212464
    %v707 = vsel %vm703, %v691, %v706
    %v708 = vsel %vm702, %v705, %v707
    %v709 = vsel %vm701, %v688, %v691
    %v710 = vsel %vm704, %v697, 920167782
    %v711 = vsel %vm703, %v694, %v710
    %v712 = vsel %vm702, %v709, %v711
    %v713 = vsel %vm701, %v691, %v694
    %v714 = vsel %vm704, %v700, 1326507024
    %v715 = vsel %vm703, %v697, %v714
    %v716 = vsel %vm702, %v713, %v715
    %v717 = vshll.u32 %v677, 8
    %v718 = vmul.u32.u64.compose %v717, %v716
    %v719 = vextract.low.u32 %v718
    %v720 = vextract.high.u32 %v718
    %v721 = vmul.u32.u64.compose %v717, %v712
    %v722 = vextract.low.u32 %v721
    %v723 = vextract.high.u32 %v721
    %v724 = vmul.u32 %v717, %v708
    %v725 = vadd.s32 %v720, %v722
    %vm726 = vc.u32 %v720, %v722
    %v727 = vadd.s32 %v723, 1
    %v728 = vsel %vm726, %v727, %v723
    %v729 = vadd.s32 %v724, %v728
    %v730 = vadd.s32 %v729, 536870912
    %v731 = vshrl.u32 %v730, 30
    %v732 = vshll.u32 %v731, 30
    %v733 = vsub.s32 %v729, %v732
    %vm734 = vcmp.lt.s32.totalorder %v733, 0
    %v735 = vsub.s32 0, %v733
    %v736 = vsel %vm734, %v735, %v733
    %v737 = vclz %v736
    %v738 = vsub.s32 %v737, 2
    %vm739 = vcmp.gt.s32.totalorder 0, %v738
    %v740 = vsel %vm739, 0, %v738
    %v741 = vsub.s32 32, %v740
    %v742 = vshll.u32 %v733, %v740
    %v743 = vshrl.u32 %v725, %v741
    %v744 = vor.u32 %v742, %v743
    %v745 = vsub.s32 4294967266, %v740
    %v746 = vadd.s32 %v745, 127
    %v747 = vshll.u32 %v746, 23
    %v748 = vor.u32 4788187, %v747
    %v749 = vand.u32 2147483647, %v748
    %v751 = vcvt.s32.f32 %v744
    %v752 = vmul.f32 %v751, %v749
    %v753 = vxor.u32 %v752, 2147483648
    %v754 = vsel %vm671, %v753, %v752
    %v755 = vsub.s32 4, %v731
    %v756 = vsel %vm671, %v755, %v731
    %v757 = vsel %vm670, %v564, %v754
    %v758 = vsel %vm670, 0, %v756
    %v759 = vcosq.f32.pop %v757
    %v760 = vsinq.f32.pop %v757
    %vm761 = vweird.f32 %v564
    %v762 = vand.u32 %v758, 3
    %vm763 = vcmp.lt.s32.totalorder %v762, 2
    %vm764 = vcmp.eq.s32.totalorder %v762, 0
    %v765 = vxor.u32 %v760, 2147483648
    %v766 = vsel %vm764, %v759, %v765
    %vm767 = vcmp.eq.s32.totalorder %v762, 2
    %v768 = vxor.u32 %v759, 2147483648
    %v769 = vsel %vm767, %v768, %v760
    %v770 = vsel %vm763, %v766, %v769
    %v771 = vsel %vm761, nan, %v770
    %v772 = vand.u32 2147483647, %v565
    %vm773 = vcmp.le.f32.partialorder %v772, 0.7853982
    %vm774 = vcmp.lt.s32.totalorder %v565, 0
    %v775 = vand.u32 %v565, 2139095040
    %v776 = vshrl.u32 %v775, 23
    %v777 = vsub.s32 %v776, 127
    %v778 = vand.u32 2147483647, %v565
    %v779 = vand.u32 %v778, 8388607
    %v780 = vor.u32 %v779, 8388608
    %v781 = vsub.s32 0, %v780
    %v782 = vadd.s32 %v777, 1
    %vm783 = vcmp.gt.s32.totalorder %v782, 0
    %v784 = vsel %vm783, %v782, 0
    %v785 = vshrl.u32 %v784, 5
    %v786 = vand.u32 %v784, 31
    %v787 = vsub.s32 32, %v786
    %v788 = vshrl.u32 683565275, %v787
    %v789 = vshll.u32 683565275, %v786
    %v790 = vshrl.u32 2475754826, %v787
    %v791 = vor.u32 %v789, %v790
    %v792 = vshll.u32 2475754826, %v786
    %v793 = vshrl.u32 2131351028, %v787
    %v794 = vor.u32 %v792, %v793
    %v795 = vshll.u32 2131351028, %v786
    %v796 = vshrl.u32 2102212464, %v787
    %v797 = vor.u32 %v795, %v796
    %v798 = vshll.u32 2102212464, %v786
    %v799 = vshrl.u32 920167782, %v787
    %v800 = vor.u32 %v798, %v799
    %v801 = vshll.u32 920167782, %v786
    %v802 = vshrl.u32 1326507024, %v787
    %v803 = vor.u32 %v801, %v802
    %vm804 = vcmp.lt.s32.totalorder %v785, 1
    %vm805 = vcmp.lt.s32.totalorder %v785, 2
    %vm806 = vcmp.lt.s32.totalorder %v785, 3
    %vm807 = vcmp.lt.s32.totalorder %v785, 4
    %v808 = vsel %vm804, %v788, %v791
    %v809 = vsel %vm807, %v797, 2102212464
    %v810 = vsel %vm806, %v794, %v809
    %v811 = vsel %vm805, %v808, %v810
    %v812 = vsel %vm804, %v791, %v794
    %v813 = vsel %vm807, %v800, 920167782
    %v814 = vsel %vm806, %v797, %v813
    %v815 = vsel %vm805, %v812, %v814
    %v816 = vsel %vm804, %v794, %v797
    %v817 = vsel %vm807, %v803, 1326507024
    %v818 = vsel %vm806, %v800, %v817
    %v819 = vsel %vm805, %v816, %v818
    %v820 = vshll.u32 %v780, 8
    %v821 = vmul.u32.u64.compose %v820, %v819
    %v822 = vextract.low.u32 %v821
    %v823 = vextract.high.u32 %v821
    %v824 = vmul.u32.u64.compose %v820, %v815
    %v825 = vextract.low.u32 %v824
    %v826 = vextract.high.u32 %v824
    %v827 = vmul.u32 %v820, %v811
    %v828 = vadd.s32 %v823, %v825
    %vm829 = vc.u32 %v823, %v825
    %v830 = vadd.s32 %v826, 1
    %v831 = vsel %vm829, %v830, %v826
    %v832 = vadd.s32 %v827, %v831
    %v833 = vadd.s32 %v832, 536870912
    %v834 = vshrl.u32 %v833, 30
    %v835 = vshll.u32 %v834, 30
    %v836 = vsub.s32 %v832, %v835
    %vm837 = vcmp.lt.s32.totalorder %v836, 0
    %v838 = vsub.s32 0, %v836
    %v839 = vsel %vm837, %v838, %v836
    %v840 = vclz %v839
    %v841 = vsub.s32 %v840, 2
    %vm842 = vcmp.gt.s32.totalorder 0, %v841
    %v843 = vsel %vm842, 0, %v841
    %v844 = vsub.s32 32, %v843
    %v845 = vshll.u32 %v836, %v843
    %v846 = vshrl.u32 %v828, %v844
    %v847 = vor.u32 %v845, %v846
    %v848 = vsub.s32 4294967266, %v843
    %v849 = vadd.s32 %v848, 127
    %v850 = vshll.u32 %v849, 23
    %v851 = vor.u32 4788187, %v850
    %v852 = vand.u32 2147483647, %v851
    %v854 = vcvt.s32.f32 %v847
    %v855 = vmul.f32 %v854, %v852
    %v856 = vxor.u32 %v855, 2147483648
    %v857 = vsel %vm774, %v856, %v855
    %v858 = vsub.s32 4, %v834
    %v859 = vsel %vm774, %v858, %v834
    %v860 = vsel %vm773, %v565, %v857
    %v861 = vsel %vm773, 0, %v859
    %v862 = vcosq.f32.pop %v860
    %v863 = vsinq.f32.pop %v860
    %vm864 = vweird.f32 %v565
    %v865 = vand.u32 %v861, 3
    %vm866 = vcmp.lt.s32.totalorder %v865, 2
    %vm867 = vcmp.eq.s32.totalorder %v865, 0
    %v868 = vxor.u32 %v863, 2147483648
    %v869 = vsel %vm867, %v862, %v868
    %vm870 = vcmp.eq.s32.totalorder %v865, 2
    %v871 = vxor.u32 %v862, 2147483648
    %v872 = vsel %vm870, %v871, %v863
    %v873 = vsel %vm866, %v869, %v872
    %v874 = vsel %vm864, nan, %v873
    %v875 = vand.u32 2147483647, %v563
    %vm876 = vcmp.le.f32.partialorder %v875, 0.7853982
    %vm877 = vcmp.lt.s32.totalorder %v563, 0
    %v878 = vand.u32 %v563, 2139095040
    %v879 = vshrl.u32 %v878, 23
    %v880 = vsub.s32 %v879, 127
    %v881 = vand.u32 2147483647, %v563
    %v882 = vand.u32 %v881, 8388607
    %v883 = vor.u32 %v882, 8388608
    %v884 = vsub.s32 0, %v883
    %v885 = vadd.s32 %v880, 1
    %vm886 = vcmp.gt.s32.totalorder %v885, 0
    %v887 = vsel %vm886, %v885, 0
    %v888 = vshrl.u32 %v887, 5
    %v889 = vand.u32 %v887, 31
    %v890 = vsub.s32 32, %v889
    %v891 = vshrl.u32 683565275, %v890
    %v892 = vshll.u32 683565275, %v889
    %v893 = vshrl.u32 2475754826, %v890
    %v894 = vor.u32 %v892, %v893
    %v895 = vshll.u32 2475754826, %v889
    %v896 = vshrl.u32 2131351028, %v890
    %v897 = vor.u32 %v895, %v896
    %v898 = vshll.u32 2131351028, %v889
    %v899 = vshrl.u32 2102212464, %v890
    %v900 = vor.u32 %v898, %v899
    %v901 = vshll.u32 2102212464, %v889
    %v902 = vshrl.u32 920167782, %v890
    %v903 = vor.u32 %v901, %v902
    %v904 = vshll.u32 920167782, %v889
    %v905 = vshrl.u32 1326507024, %v890
    %v906 = vor.u32 %v904, %v905
    %vm907 = vcmp.lt.s32.totalorder %v888, 1
    %vm908 = vcmp.lt.s32.totalorder %v888, 2
    %vm909 = vcmp.lt.s32.totalorder %v888, 3
    %vm910 = vcmp.lt.s32.totalorder %v888, 4
    %v911 = vsel %vm907, %v891, %v894
    %v912 = vsel %vm910, %v900, 2102212464
    %v913 = vsel %vm909, %v897, %v912
    %v914 = vsel %vm908, %v911, %v913
    %v915 = vsel %vm907, %v894, %v897
    %v916 = vsel %vm910, %v903, 920167782
    %v917 = vsel %vm909, %v900, %v916
    %v918 = vsel %vm908, %v915, %v917
    %v919 = vsel %vm907, %v897, %v900
    %v920 = vsel %vm910, %v906, 1326507024
    %v921 = vsel %vm909, %v903, %v920
    %v922 = vsel %vm908, %v919, %v921
    %v923 = vshll.u32 %v883, 8
    %v924 = vmul.u32.u64.compose %v923, %v922
    %v925 = vextract.low.u32 %v924
    %v926 = vextract.high.u32 %v924
    %v927 = vmul.u32.u64.compose %v923, %v918
    %v928 = vextract.low.u32 %v927
    %v929 = vextract.high.u32 %v927
    %v930 = vmul.u32 %v923, %v914
    %v931 = vadd.s32 %v926, %v928
    %vm932 = vc.u32 %v926, %v928
    %v933 = vadd.s32 %v929, 1
    %v934 = vsel %vm932, %v933, %v929
    %v935 = vadd.s32 %v930, %v934
    %v936 = vadd.s32 %v935, 536870912
    %v937 = vshrl.u32 %v936, 30
    %v938 = vshll.u32 %v937, 30
    %v939 = vsub.s32 %v935, %v938
    %vm940 = vcmp.lt.s32.totalorder %v939, 0
    %v941 = vsub.s32 0, %v939
    %v942 = vsel %vm940, %v941, %v939
    %v943 = vclz %v942
    %v944 = vsub.s32 %v943, 2
    %vm945 = vcmp.gt.s32.totalorder 0, %v944
    %v946 = vsel %vm945, 0, %v944
    %v947 = vsub.s32 32, %v946
    %v948 = vshll.u32 %v939, %v946
    %v949 = vshrl.u32 %v931, %v947
    %v950 = vor.u32 %v948, %v949
    %v951 = vsub.s32 4294967266, %v946
    %v952 = vadd.s32 %v951, 127
    %v953 = vshll.u32 %v952, 23
    %v954 = vor.u32 4788187, %v953
    %v955 = vand.u32 2147483647, %v954
    %v957 = vcvt.s32.f32 %v950
    %v958 = vmul.f32 %v957, %v955
    %v959 = vxor.u32 %v958, 2147483648
    %v960 = vsel %vm877, %v959, %v958
    %v961 = vsub.s32 4, %v937
    %v962 = vsel %vm877, %v961, %v937
    %v963 = vsel %vm876, %v563, %v960
    %v964 = vsel %vm876, 0, %v962
    %v965 = vcosq.f32.pop %v963
    %v966 = vsinq.f32.pop %v963
    %vm967 = vweird.f32 %v563
    %v968 = vadd.s32 %v964, 3
    %v969 = vand.u32 %v968, 3
    %vm970 = vcmp.lt.s32.totalorder %v969, 2
    %vm971 = vcmp.eq.s32.totalorder %v969, 0
    %v972 = vxor.u32 %v966, 2147483648
    %v973 = vsel %vm971, %v965, %v972
    %vm974 = vcmp.eq.s32.totalorder %v969, 2
    %v975 = vxor.u32 %v965, 2147483648
    %v976 = vsel %vm974, %v975, %v966
    %v977 = vsel %vm970, %v973, %v976
    %v978 = vsel %vm967, nan, %v977
    %v979 = vand.u32 2147483647, %v564
    %vm980 = vcmp.le.f32.partialorder %v979, 0.7853982
    %vm981 = vcmp.lt.s32.totalorder %v564, 0
    %v982 = vand.u32 %v564, 2139095040
    %v983 = vshrl.u32 %v982, 23
    %v984 = vsub.s32 %v983, 127
    %v985 = vand.u32 2147483647, %v564
    %v986 = vand.u32 %v985, 8388607
    %v987 = vor.u32 %v986, 8388608
    %v988 = vsub.s32 0, %v987
    %v989 = vadd.s32 %v984, 1
    %vm990 = vcmp.gt.s32.totalorder %v989, 0
    %v991 = vsel %vm990, %v989, 0
    %v992 = vshrl.u32 %v991, 5
    %v993 = vand.u32 %v991, 31
    %v994 = vsub.s32 32, %v993
    %v995 = vshrl.u32 683565275, %v994
    %v996 = vshll.u32 683565275, %v993
    %v997 = vshrl.u32 2475754826, %v994
    %v998 = vor.u32 %v996, %v997
    %v999 = vshll.u32 2475754826, %v993
    %v1000 = vshrl.u32 2131351028, %v994
    %v1001 = vor.u32 %v999, %v1000
    %v1002 = vshll.u32 2131351028, %v993
    %v1003 = vshrl.u32 2102212464, %v994
    %v1004 = vor.u32 %v1002, %v1003
    %v1005 = vshll.u32 2102212464, %v993
    %v1006 = vshrl.u32 920167782, %v994
    %v1007 = vor.u32 %v1005, %v1006
    %v1008 = vshll.u32 920167782, %v993
    %v1009 = vshrl.u32 1326507024, %v994
    %v1010 = vor.u32 %v1008, %v1009
    %vm1011 = vcmp.lt.s32.totalorder %v992, 1
    %vm1012 = vcmp.lt.s32.totalorder %v992, 2
    %vm1013 = vcmp.lt.s32.totalorder %v992, 3
    %vm1014 = vcmp.lt.s32.totalorder %v992, 4
    %v1015 = vsel %vm1011, %v995, %v998
    %v1016 = vsel %vm1014, %v1004, 2102212464
    %v1017 = vsel %vm1013, %v1001, %v1016
    %v1018 = vsel %vm1012, %v1015, %v1017
    %v1019 = vsel %vm1011, %v998, %v1001
    %v1020 = vsel %vm1014, %v1007, 920167782
    %v1021 = vsel %vm1013, %v1004, %v1020
    %v1022 = vsel %vm1012, %v1019, %v1021
    %v1023 = vsel %vm1011, %v1001, %v1004
    %v1024 = vsel %vm1014, %v1010, 1326507024
    %v1025 = vsel %vm1013, %v1007, %v1024
    %v1026 = vsel %vm1012, %v1023, %v1025
    %v1027 = vshll.u32 %v987, 8
    %v1028 = vmul.u32.u64.compose %v1027, %v1026
    %v1029 = vextract.low.u32 %v1028
    %v1030 = vextract.high.u32 %v1028
    %v1031 = vmul.u32.u64.compose %v1027, %v1022
    %v1032 = vextract.low.u32 %v1031
    %v1033 = vextract.high.u32 %v1031
    %v1034 = vmul.u32 %v1027, %v1018
    %v1035 = vadd.s32 %v1030, %v1032
    %vm1036 = vc.u32 %v1030, %v1032
    %v1037 = vadd.s32 %v1033, 1
    %v1038 = vsel %vm1036, %v1037, %v1033
    %v1039 = vadd.s32 %v1034, %v1038
    %v1040 = vadd.s32 %v1039, 536870912
    %v1041 = vshrl.u32 %v1040, 30
    %v1042 = vshll.u32 %v1041, 30
    %v1043 = vsub.s32 %v1039, %v1042
    %vm1044 = vcmp.lt.s32.totalorder %v1043, 0
    %v1045 = vsub.s32 0, %v1043
    %v1046 = vsel %vm1044, %v1045, %v1043
    %v1047 = vclz %v1046
    %v1048 = vsub.s32 %v1047, 2
    %vm1049 = vcmp.gt.s32.totalorder 0, %v1048
    %v1050 = vsel %vm1049, 0, %v1048
    %v1051 = vsub.s32 32, %v1050
    %v1052 = vshll.u32 %v1043, %v1050
    %v1053 = vshrl.u32 %v1035, %v1051
    %v1054 = vor.u32 %v1052, %v1053
    %v1055 = vsub.s32 4294967266, %v1050
    %v1056 = vadd.s32 %v1055, 127
    %v1057 = vshll.u32 %v1056, 23
    %v1058 = vor.u32 4788187, %v1057
    %v1059 = vand.u32 2147483647, %v1058
    %v1061 = vcvt.s32.f32 %v1054
    %v1062 = vmul.f32 %v1061, %v1059
    %v1063 = vxor.u32 %v1062, 2147483648
    %v1064 = vsel %vm981, %v1063, %v1062
    %v1065 = vsub.s32 4, %v1041
    %v1066 = vsel %vm981, %v1065, %v1041
    %v1067 = vsel %vm980, %v564, %v1064
    %v1068 = vsel %vm980, 0, %v1066
    %v1069 = vcosq.f32.pop %v1067
    %v1070 = vsinq.f32.pop %v1067
    %vm1071 = vweird.f32 %v564
    %v1072 = vadd.s32 %v1068, 3
    %v1073 = vand.u32 %v1072, 3
    %vm1074 = vcmp.lt.s32.totalorder %v1073, 2
    %vm1075 = vcmp.eq.s32.totalorder %v1073, 0
    %v1076 = vxor.u32 %v1070, 2147483648
    %v1077 = vsel %vm1075, %v1069, %v1076
    %vm1078 = vcmp.eq.s32.totalorder %v1073, 2
    %v1079 = vxor.u32 %v1069, 2147483648
    %v1080 = vsel %vm1078, %v1079, %v1070
    %v1081 = vsel %vm1074, %v1077, %v1080
    %v1082 = vsel %vm1071, nan, %v1081
    %v1083 = vand.u32 2147483647, %v565
    %vm1084 = vcmp.le.f32.partialorder %v1083, 0.7853982
    %vm1085 = vcmp.lt.s32.totalorder %v565, 0
    %v1086 = vand.u32 %v565, 2139095040
    %v1087 = vshrl.u32 %v1086, 23
    %v1088 = vsub.s32 %v1087, 127
    %v1089 = vand.u32 2147483647, %v565
    %v1090 = vand.u32 %v1089, 8388607
    %v1091 = vor.u32 %v1090, 8388608
    %v1092 = vsub.s32 0, %v1091
    %v1093 = vadd.s32 %v1088, 1
    %vm1094 = vcmp.gt.s32.totalorder %v1093, 0
    %v1095 = vsel %vm1094, %v1093, 0
    %v1096 = vshrl.u32 %v1095, 5
    %v1097 = vand.u32 %v1095, 31
    %v1098 = vsub.s32 32, %v1097
    %v1099 = vshrl.u32 683565275, %v1098
    %v1100 = vshll.u32 683565275, %v1097
    %v1101 = vshrl.u32 2475754826, %v1098
    %v1102 = vor.u32 %v1100, %v1101
    %v1103 = vshll.u32 2475754826, %v1097
    %v1104 = vshrl.u32 2131351028, %v1098
    %v1105 = vor.u32 %v1103, %v1104
    %v1106 = vshll.u32 2131351028, %v1097
    %v1107 = vshrl.u32 2102212464, %v1098
    %v1108 = vor.u32 %v1106, %v1107
    %v1109 = vshll.u32 2102212464, %v1097
    %v1110 = vshrl.u32 920167782, %v1098
    %v1111 = vor.u32 %v1109, %v1110
    %v1112 = vshll.u32 920167782, %v1097
    %v1113 = vshrl.u32 1326507024, %v1098
    %v1114 = vor.u32 %v1112, %v1113
    %vm1115 = vcmp.lt.s32.totalorder %v1096, 1
    %vm1116 = vcmp.lt.s32.totalorder %v1096, 2
    %vm1117 = vcmp.lt.s32.totalorder %v1096, 3
    %vm1118 = vcmp.lt.s32.totalorder %v1096, 4
    %v1119 = vsel %vm1115, %v1099, %v1102
    %v1120 = vsel %vm1118, %v1108, 2102212464
    %v1121 = vsel %vm1117, %v1105, %v1120
    %v1122 = vsel %vm1116, %v1119, %v1121
    %v1123 = vsel %vm1115, %v1102, %v1105
    %v1124 = vsel %vm1118, %v1111, 920167782
    %v1125 = vsel %vm1117, %v1108, %v1124
    %v1126 = vsel %vm1116, %v1123, %v1125
    %v1127 = vsel %vm1115, %v1105, %v1108
    %v1128 = vsel %vm1118, %v1114, 1326507024
    %v1129 = vsel %vm1117, %v1111, %v1128
    %v1130 = vsel %vm1116, %v1127, %v1129
    %v1131 = vshll.u32 %v1091, 8
    %v1132 = vmul.u32.u64.compose %v1131, %v1130
    %v1133 = vextract.low.u32 %v1132
    %v1134 = vextract.high.u32 %v1132
    %v1135 = vmul.u32.u64.compose %v1131, %v1126
    %v1136 = vextract.low.u32 %v1135
    %v1137 = vextract.high.u32 %v1135
    %v1138 = vmul.u32 %v1131, %v1122
    %v1139 = vadd.s32 %v1134, %v1136
    %vm1140 = vc.u32 %v1134, %v1136
    %v1141 = vadd.s32 %v1137, 1
    %v1142 = vsel %vm1140, %v1141, %v1137
    %v1143 = vadd.s32 %v1138, %v1142
    %v1144 = vadd.s32 %v1143, 536870912
    %v1145 = vshrl.u32 %v1144, 30
    %v1146 = vshll.u32 %v1145, 30
    %v1147 = vsub.s32 %v1143, %v1146
    %vm1148 = vcmp.lt.s32.totalorder %v1147, 0
    %v1149 = vsub.s32 0, %v1147
    %v1150 = vsel %vm1148, %v1149, %v1147
    %v1151 = vclz %v1150
    %v1152 = vsub.s32 %v1151, 2
    %vm1153 = vcmp.gt.s32.totalorder 0, %v1152
    %v1154 = vsel %vm1153, 0, %v1152
    %v1155 = vsub.s32 32, %v1154
    %v1156 = vshll.u32 %v1147, %v1154
    %v1157 = vshrl.u32 %v1139, %v1155
    %v1158 = vor.u32 %v1156, %v1157
    %v1159 = vsub.s32 4294967266, %v1154
    %v1160 = vadd.s32 %v1159, 127
    %v1161 = vshll.u32 %v1160, 23
    %v1162 = vor.u32 4788187, %v1161
    %v1163 = vand.u32 2147483647, %v1162
    %v1165 = vcvt.s32.f32 %v1158
    %v1166 = vmul.f32 %v1165, %v1163
    %v1167 = vxor.u32 %v1166, 2147483648
    %v1168 = vsel %vm1085, %v1167, %v1166
    %v1169 = vsub.s32 4, %v1145
    %v1170 = vsel %vm1085, %v1169, %v1145
    %v1171 = vsel %vm1084, %v565, %v1168
    %v1172 = vsel %vm1084, 0, %v1170
    %v1173 = vcosq.f32.pop %v1171
    %v1174 = vsinq.f32.pop %v1171
    %vm1175 = vweird.f32 %v565
    %v1176 = vadd.s32 %v1172, 3
    %v1177 = vand.u32 %v1176, 3
    %vm1178 = vcmp.lt.s32.totalorder %v1177, 2
    %vm1179 = vcmp.eq.s32.totalorder %v1177, 0
    %v1180 = vxor.u32 %v1174, 2147483648
    %v1181 = vsel %vm1179, %v1173, %v1180
    %vm1182 = vcmp.eq.s32.totalorder %v1177, 2
    %v1183 = vxor.u32 %v1173, 2147483648
    %v1184 = vsel %vm1182, %v1183, %v1174
    %v1185 = vsel %vm1178, %v1181, %v1184
    %v1186 = vsel %vm1175, nan, %v1185
    %v1187 = vmul.f32 %v84, %v668
    %v1188 = vmul.f32 %v90, %v771
    %v1189 = vmul.f32 %v86, %v874
    %v1190 = vmul.f32 %v85, %v978
    %v1191 = vmul.f32 %v91, %v1082
    %v1192 = vmul.f32 %v87, %v1186
    %v1193 = vsub.f32 %v1187, %v1190
    %v1194 = vsub.f32 %v1188, %v1191
    %v1195 = vsub.f32 %v1189, %v1192
    %v1196 = vmul.f32 %v84, %v978
    %v1197 = vmul.f32 %v90, %v1082
    %v1198 = vmul.f32 %v86, %v1186
    %v1199 = vmul.f32 %v85, %v668
    %v1200 = vmul.f32 %v91, %v771
    %v1201 = vmul.f32 %v87, %v874
    %v1202 = vadd.f32 %v1196, %v1199
    %v1203 = vadd.f32 %v1197, %v1200
    %v1204 = vadd.f32 %v1198, %v1201
    %v1205 = vmul.f32 %v158, %v544
    %v1206 = vmul.f32 %v159, %v545
    %v1207 = vmul.f32 %v160, %v546
    %v1211 = vrot.slane %v544, 4
    %v1212 = vrot.slane %v545, 4
    %v1213 = vrot.slane %v546, 4
    %v1217 = vmul.f32 %v161, %v1211
    %v1218 = vmul.f32 %v162, %v1212
    %v1219 = vmul.f32 %v163, %v1213
    %v1220 = vsub.f32 %v1205, %v1217
    %v1221 = vsub.f32 %v1206, %v1218
    %v1222 = vsub.f32 %v1207, %v1219
    %v1223 = vmul.f32 %v158, %v1211
    %v1224 = vmul.f32 %v159, %v1212
    %v1225 = vmul.f32 %v160, %v1213
    %v1226 = vmul.f32 %v161, %v544
    %v1227 = vmul.f32 %v162, %v545
    %v1228 = vmul.f32 %v163, %v546
    %v1229 = vadd.f32 %v1223, %v1226
    %v1230 = vadd.f32 %v1224, %v1227
    %v1231 = vadd.f32 %v1225, %v1228
    %v1232 = vmul.f32 %v561, %v1229
    %v1233 = vmul.f32 %v561, %v1230
    %v1234 = vmul.f32 %v561, %v1231
    %v1235 = vsub.f32 %v1193, %v1232
    %v1236 = vsub.f32 %v1194, %v1233
    %v1237 = vsub.f32 %v1195, %v1234
    %v1238 = vmul.f32 %v561, %v1220
    %v1239 = vmul.f32 %v561, %v1221
    %v1240 = vmul.f32 %v561, %v1222
    %v1241 = vadd.f32 %v1202, %v1238
    %v1242 = vadd.f32 %v1203, %v1239
    %v1243 = vadd.f32 %v1204, %v1240
    %v1247 = vcombine.low %v1235, %v1236
    %1248 = vrot.lane.b32.xlu0 %v1247, 123
    %v1249 = vpop.permute.xlu0 %1248
    %1250 = vrot.lane.b32.xlu0 %v1237, 123
    %v1251 = vpop.permute.xlu0 %1250
    %v1252 = vrot.slane %v1249, 4
    %v1253 = vrot.slane %v1251, 4
    %v1254 = vsel %vm191, %v1252, %v1253
    %vm1255 = vcmask 1006592
    %v1256 = vsel %vm1255, %v1249, %v1254
    %1258 = vst [vmem:[#allocation12] sm:$0xff] %v1256
    %v1262 = vcombine.low %v1241, %v1242
    %1263 = vrot.lane.b32.xlu0 %v1262, 123
    %v1264 = vpop.permute.xlu0 %1263
    %1265 = vrot.lane.b32.xlu0 %v1243, 123
    %v1266 = vpop.permute.xlu0 %1265
    %v1267 = vrot.slane %v1264, 4
    %v1268 = vrot.slane %v1266, 4
    %v1269 = vsel %vm191, %v1267, %v1268
    %v1270 = vsel %vm1255, %v1264, %v1269
    %s1272 = scalar_lea.vmem [#allocation12], 8
    %1273 = vst [vmem:[%s1272] sm:$0xff] %v1270
    // Predicated region
    $region42: #{tpu_custom_call.1} parent=1 // pred_check
      _
    $region43: #{tpu_custom_call.1} parent=1 // pred_check_branch
      %1275 = sbr.rel (0) target = $region45
    $region44: #{tpu_custom_call.1} parent=1 // pred_region
      %s1277 = ssub.s32 256, 256
      %1278 = vsyncadd [#allocation5], %s1277
      %s1279 = sshll.u32 [#allocation12], 4
      %s1280 = int_to_ptr.vmem [resolvable:$true] %s1279
      %1285 = dma.vmem_to_hbm [thread:$0]  %s1280, 256, %s6, [#allocation5], 128, 128, 8
    $region45: #{tpu_custom_call.1} parent=1 // pred_fallthru
      _
    // Predicated region
    $region46: #{tpu_custom_call.1} parent=1 // pred_check
      _
    $region47: #{tpu_custom_call.1} parent=1 // pred_check_branch
      %1287 = sbr.rel (0) target = $region49
    $region48: #{tpu_custom_call.1} parent=1 // pred_region
      %1288 = dma.done [#allocation5], 256
    $region49: #{tpu_custom_call.1} parent=1 // pred_fallthru
      _
    %1289 = vsyncpa [#allocation4], 1
    %1290 = vsyncpa [#allocation11], 1
    %1291 = vsyncpa [#allocation5], 1
    %1292 = vsyncpa [#allocation6], 1
    %1293 = vsyncpa [#allocation8], 1

</llo_original>
